<compile_context>
chip_gen: v6e
topology: v6e:2x2x1
jax: 0.10.0
libtpu: 0.0.40
codegen_flags: <defaults>
</compile_context>

<pallas_src>
import functools

import jax
import jax.numpy as jnp
from jax.experimental import pallas as pl
from jax.experimental.pallas import tpu as pltpu

EMBED_SIZE = 32
BN_EPS = 1e-5

_VMEM_LIMIT = None


def _vmem_limit():
    """Generation-aware VMEM cap: 3/4 of physical, capped at 96 MiB."""
    global _VMEM_LIMIT
    if _VMEM_LIMIT is None:
        cap = 64 * 1024 * 1024
        try:
            cap = int(getattr(pltpu.get_tpu_info(), "vmem_capacity_bytes", cap))
        except Exception:
            pass
        _VMEM_LIMIT = min((cap * 3) // 4, 96 * 1024 * 1024)
    return _VMEM_LIMIT


def _pad_lanes(c):
    return ((c + 127) // 128) * 128


def _choose_tm(M, K, TN, N):
    """Largest M tile whose double-buffered tiles fit ~half the VMEM cap."""
    budget = _vmem_limit() // 2
    tm = 8
    for cand in (2048, 1024, 512, 256, 128, 64, 32, 16, 8):
        # x, w, out, residual tiles double-buffered in bf16 + f32 epilogue tmp
        need = 4 * (cand * K + K * TN + 2 * cand * TN) + 4 * cand * TN
        if need <= budget:
            tm = cand
            break
    if M <= tm:
        tm = M
        if N == TN and M >= 32 and M % 16 == 0:
            tm = M // 2            # >=2 grid steps so both v7x TCs get work
    return tm


# ----------------------------------------------------------------------------
# Pallas kernels
# ----------------------------------------------------------------------------
def _fused_matmul_kernel(x_ref, w_ref, s_ref, b_ref, *rest, relu, has_res):
    """acc = x @ w (bf16 MXU, f32 acc); acc = acc*scale + bias (+res) (+relu)."""
    if has_res:
        res_ref, o_ref = rest
    else:
        (o_ref,) = rest
    acc = jnp.dot(x_ref[...], w_ref[...], preferred_element_type=jnp.float32)
    acc = acc * s_ref[...] + b_ref[...]
    if has_res:
        acc = acc + res_ref[...].astype(jnp.float32)
    if relu:
        acc = jnp.maximum(acc, 0.0)
    o_ref[...] = acc.astype(o_ref.dtype)


def fused_matmul(x, w, scale, bias, *, relu, residual=None):
    """(M,K)@(K,N) in bf16, fused folded-BN affine, optional residual + ReLU."""
    M, K = x.shape
    N = w.shape[1]
    TN = 256 if N % 256 == 0 else 128
    TM = _choose_tm(M, K, TN, N)

    x = x.astype(jnp.bfloat16)
    w = w.astype(jnp.bfloat16)
    scale = scale.astype(jnp.float32)
    bias = bias.astype(jnp.float32)

    in_specs = [
        pl.BlockSpec((TM, K), lambda i, j: (i, 0)),
        pl.BlockSpec((K, TN), lambda i, j: (0, j)),
        pl.BlockSpec((1, TN), lambda i, j: (0, j)),
        pl.BlockSpec((1, TN), lambda i, j: (0, j)),
    ]
    args = [x, w, scale, bias]
    if residual is not None:
        in_specs.append(pl.BlockSpec((TM, TN), lambda i, j: (i, j)))
        args.append(residual.astype(jnp.bfloat16))

    kernel = functools.partial(
        _fused_matmul_kernel, relu=relu, has_res=residual is not None)
    return pl.pallas_call(
        kernel,
        out_shape=jax.ShapeDtypeStruct((M, N), jnp.bfloat16),
        grid=(pl.cdiv(M, TM), pl.cdiv(N, TN)),
        in_specs=in_specs,
        out_specs=pl.BlockSpec((TM, TN), lambda i, j: (i, j)),
        compiler_params=pltpu.CompilerParams(
            dimension_semantics=("parallel", "parallel"),
            vmem_limit_bytes=_vmem_limit()),
    )(*args)


def _conv3x3_s1_kernel(x_ref, w_ref, s_ref, b_ref, o_ref, acc_ref,
                       *, H, W, relu):
    """3x3 stride-1 conv over one image held flat in VMEM.

    x_ref: (H*W + 2*(W+1), C) zero-halo'd flattened image (bf16)
    w_ref: (9, C, TN) per-tap weights; o_ref: (H*W, TN); acc_ref: f32 scratch.
    Boundary columns of the +/-1 column taps are zeroed by a (M,1) mask.
    """
    M = H * W
    col = jax.lax.broadcasted_iota(jnp.int32, (M, 1), 0) % W
    mask_l = (col > 0).astype(jnp.bfloat16)        # invalid when x+dx == -1
    mask_r = (col < (W - 1)).astype(jnp.bfloat16)  # invalid when x+dx == W
    first = True
    for dy in (-1, 0, 1):
        for dx in (-1, 0, 1):
            t = (dy + 1) * 3 + (dx + 1)
            start = (W + 1) + dy * W + dx          # static, always in-bounds
            xs = x_ref[pl.ds(start, M), :]
            if dx == -1:
                xs = xs * mask_l
            elif dx == 1:
                xs = xs * mask_r
            part = jnp.dot(xs, w_ref[t], preferred_element_type=jnp.float32)
            if first:
                acc_ref[...] = part
                first = False
            else:
                acc_ref[...] += part
    acc = acc_ref[...] * s_ref[...] + b_ref[...]
    if relu:
        acc = jnp.maximum(acc, 0.0)
    o_ref[...] = acc.astype(o_ref.dtype)


def conv3x3_s1(x, p, *, relu=True):
    """3x3 / stride-1 / pad-1 conv + folded BN (+ReLU) without HBM im2col."""
    B, H, W, C = x.shape
    Np = p["wmat"].shape[1]
    M = H * W
    halo = W + 1
    x_halo = jnp.pad(x.reshape(B, M, C).astype(jnp.bfloat16),
                     ((0, 0), (halo, halo), (0, 0)))
    w3 = p["wmat"].reshape(9, C, Np)
    TN = 256 if Np % 256 == 0 else 128
    out = pl.pallas_call(
        functools.partial(_conv3x3_s1_kernel, H=H, W=W, relu=relu),
        out_shape=jax.ShapeDtypeStruct((B, M, Np), jnp.bfloat16),
        grid=(B, Np // TN),
        in_specs=[
            pl.BlockSpec((None, M + 2 * halo, C), lambda b, j: (b, 0, 0)),
            pl.BlockSpec((9, C, TN), lambda b, j: (0, 0, j)),
            pl.BlockSpec((1, TN), lambda b, j: (0, j)),
            pl.BlockSpec((1, TN), lambda b, j: (0, j)),
        ],
        out_specs=pl.BlockSpec((None, M, TN), lambda b, j: (b, 0, j)),
        scratch_shapes=[pltpu.VMEM((M, TN), jnp.float32)],
        compiler_params=pltpu.CompilerParams(
            dimension_semantics=("parallel", "parallel"),
            vmem_limit_bytes=_vmem_limit()),
    )(x_halo, w3, p["scale"], p["bias"])
    return out.reshape(B, H, W, Np)


def _maxpool_kernel(x_ref, o_ref, *, kk):
    acc = x_ref[0]
    for i in range(1, kk):
        acc = jnp.maximum(acc, x_ref[i])
    o_ref[...] = acc


def _pool_embed_kernel(x_ref, w_ref, b_ref, o_ref, *, inv_hw):
    """Global average pool over HW (lane=C layout) + Linear(C, Epad)."""
    pooled = jnp.sum(x_ref[...].astype(jnp.float32), axis=1) * inv_hw
    o_ref[...] = (
        jnp.dot(pooled.astype(jnp.bfloat16), w_ref[...],
                preferred_element_type=jnp.float32)
        + b_ref[...])


# ----------------------------------------------------------------------------
# JAX glue (patch extraction, reshapes) around the kernels
# ----------------------------------------------------------------------------
def _extract_patches(x, kh, kw, stride, pad, pad_value=0.0):
    """NHWC -> (B*Ho*Wo, kh*kw*C) im2col, feature order (kh, kw, C)."""
    B, H, W, C = x.shape
    xp = jnp.pad(x, ((0, 0), (pad, pad), (pad, pad), (0, 0)),
                 constant_values=pad_value)
    Ho = (H + 2 * pad - kh) // stride + 1
    Wo = (W + 2 * pad - kw) // stride + 1
    cols = [xp[:, i:i + Ho * stride:stride, j:j + Wo * stride:stride, :]
            for i in range(kh) for j in range(kw)]
    patches = jnp.concatenate(cols, axis=-1)
    return patches.reshape(B * Ho * Wo, kh * kw * C), (B, Ho, Wo)


def conv_bn(x, p, *, stride, pad, relu=True, residual=None):
    """Conv2d + folded BatchNorm (+residual)(+ReLU) on NHWC bf16 activations."""
    B, H, W, C = x.shape
    kh, kw = p["kh"], p["kw"]
    wmat = p["wmat"]                      # (K, Np) bf16, channels padded
    Np = wmat.shape[1]
    if kh == 3 and kw == 3 and stride == 1 and residual is None:
        return conv3x3_s1(x, p, relu=relu)           # halo kernel, no im2col
    if kh == 1 and kw == 1:
        # 1x1 conv: no im2col needed — just (strided) reshape.
        if stride > 1:
            x = x[:, ::stride, ::stride, :]
        B, Ho, Wo, _ = x.shape
        patches = x.reshape(B * Ho * Wo, C)
    else:
        patches, (B, Ho, Wo) = _extract_patches(x, kh, kw, stride, pad)
    K = wmat.shape[0]
    if patches.shape[1] != K:             # stem K padded 147 -> 256
        patches = jnp.pad(patches, ((0, 0), (0, K - patches.shape[1])))
    res2d = None if residual is None else residual.reshape(B * Ho * Wo, Np)
    out = fused_matmul(patches, wmat, p["scale"], p["bias"],
                       relu=relu, residual=res2d)
    return out.reshape(B, Ho, Wo, Np)


def maxpool2d(x, k=3, stride=2, pad=1):
    B, H, W, C = x.shape
    xp = jnp.pad(x, ((0, 0), (pad, pad), (pad, pad), (0, 0)),
                 constant_values=-jnp.inf)
    Ho = (H + 2 * pad - k) // stride + 1
    Wo = (W + 2 * pad - k) // stride + 1
    wins = [xp[:, i:i + Ho * stride:stride, j:j + Wo * stride:stride, :]
            for i in range(k) for j in range(k)]
    stacked = jnp.stack(wins, axis=0).reshape(k * k, B * Ho * Wo, C)
    M = B * Ho * Wo
    TM = M if M <= 1024 else 1024
    if TM == M and M >= 32 and M % 16 == 0:
        TM = M // 2                                   # keep both TCs busy
    out = pl.pallas_call(
        functools.partial(_maxpool_kernel, kk=k * k),
        out_shape=jax.ShapeDtypeStruct((M, C), x.dtype),
        grid=(pl.cdiv(M, TM),),
        in_specs=[pl.BlockSpec((k * k, TM, C), lambda i: (0, i, 0))],
        out_specs=pl.BlockSpec((TM, C), lambda i: (i, 0)),
        compiler_params=pltpu.CompilerParams(
            dimension_semantics=("parallel",),
            vmem_limit_bytes=_vmem_limit()),
    )(stacked)
    return out.reshape(B, Ho, Wo, C)


def avgpool_embed(x, w_embed, b_embed, embed_size):
    """AdaptiveAvgPool2d((1,1)) + flatten + Linear(2048, embed_size)."""
    B, H, W, C = x.shape
    HW = H * W
    Ep = w_embed.shape[1]
    x3 = x.reshape(B, HW, C)
    TB = B if B < 8 else 8
    out = pl.pallas_call(
        functools.partial(_pool_embed_kernel, inv_hw=1.0 / float(HW)),
        out_shape=jax.ShapeDtypeStruct((B, Ep), jnp.float32),
        grid=(pl.cdiv(B, TB),),
        in_specs=[
            pl.BlockSpec((TB, HW, C), lambda b: (b, 0, 0)),
            pl.BlockSpec((C, Ep), lambda b: (0, 0)),
            pl.BlockSpec((1, Ep), lambda b: (0, 0)),
        ],
        out_specs=pl.BlockSpec((TB, Ep), lambda b: (b, 0)),
        compiler_params=pltpu.CompilerParams(
            dimension_semantics=("parallel",),
            vmem_limit_bytes=_vmem_limit()),
    )(x3, w_embed, b_embed)
    return out[:, :embed_size]


# ----------------------------------------------------------------------------
# Deterministic synthetic parameters (ResNet-50 topology), kernel-ready form
# ----------------------------------------------------------------------------
def _conv_params(key, cout, cin, kh, kw):
    kconv, kbn = jax.random.split(key)
    fan_in = cin * kh * kw
    w = jax.random.normal(kconv, (cout, cin, kh, kw), jnp.float32) * \
        jnp.sqrt(2.0 / fan_in)
    g1, g2 = jax.random.split(kbn)
    gamma = 1.0 + 0.1 * jax.random.normal(g1, (cout,), jnp.float32)
    beta = 0.1 * jax.random.normal(g2, (cout,), jnp.float32)
    mean = jnp.zeros((cout,), jnp.float32)
    var = jnp.ones((cout,), jnp.float32)
    scale = gamma / jnp.sqrt(var + BN_EPS)        # BN folded (eval mode)
    bias = beta - mean * scale
    return {"w": w, "scale": scale, "bias": bias}


def _prep_conv(raw, cin_pad, cout_pad, k_pad=None):
    """OIHW weight + BN -> kernel-ready bf16 (K, Np) matrix with zero padding.

    Padded input channels get zero weight rows; padded output channels get
    zero weights AND zero scale/bias, so padded lanes stay exactly zero.
    Optional k_pad zero-pads the contraction dim (stem: 147 -> 256).
    """
    w = raw["w"]
    cout, cin, kh, kw = w.shape
    w = jnp.pad(w, ((0, cout_pad - cout), (0, cin_pad - cin), (0, 0), (0, 0)))
    wmat = jnp.transpose(w, (2, 3, 1, 0)).reshape(kh * kw * cin_pad, cout_pad)
    if k_pad is not None and k_pad > wmat.shape[0]:
        wmat = jnp.pad(wmat, ((0, k_pad - wmat.shape[0]), (0, 0)))
    scale = jnp.pad(raw["scale"], (0, cout_pad - cout)).reshape(1, cout_pad)
    bias = jnp.pad(raw["bias"], (0, cout_pad - cout)).reshape(1, cout_pad)
    return {"wmat": wmat.astype(jnp.bfloat16),
            "scale": scale.astype(jnp.float32),
            "bias": bias.astype(jnp.float32),
            "kh": kh, "kw": kw}


def init_encoder_params(key, embed_size):
    cnt = [0]

    def nk():
        cnt[0] += 1
        return jax.random.fold_in(key, cnt[0])

    params = {"stem": _prep_conv(_conv_params(nk(), 64, 3, 7, 7),
                                 cin_pad=3, cout_pad=_pad_lanes(64),
                                 k_pad=256)}
    layer_cfg = [(64, 3, 1), (128, 4, 2), (256, 6, 2), (512, 3, 2)]
    inplanes = 64
    in_pad = _pad_lanes(64)                 # activation channels after maxpool
    layers = []
    for planes, nblocks, stride in layer_cfg:
        blocks = []
        for b in range(nblocks):
            s = stride if b == 0 else 1
            mid_pad = _pad_lanes(planes)
            out_pad = _pad_lanes(planes * 4)
            block = {
                "conv1": _prep_conv(_conv_params(nk(), planes, inplanes, 1, 1),
                                    in_pad, mid_pad),
                "conv2": _prep_conv(_conv_params(nk(), planes, planes, 3, 3),
                                    mid_pad, mid_pad),
                "conv3": _prep_conv(_conv_params(nk(), planes * 4, planes, 1, 1),
                                    mid_pad, out_pad),
                "stride": s,
            }
            if s != 1 or inplanes != planes * 4:
                block["downsample"] = _prep_conv(
                    _conv_params(nk(), planes * 4, inplanes, 1, 1),
                    in_pad, out_pad)
            blocks.append(block)
            inplanes = planes * 4
            in_pad = out_pad
        layers.append(blocks)
    params["layers"] = layers

    k1, k2 = jax.random.split(nk())
    Ep = _pad_lanes(embed_size)             # lane-dense final store
    embed_w = jax.random.normal(
        k1, (embed_size, 2048), jnp.float32) / jnp.sqrt(2048.0)
    embed_b = 0.01 * jax.random.normal(k2, (embed_size,), jnp.float32)
    embed_w_t = jnp.pad(jnp.transpose(embed_w), ((0, 0), (0, Ep - embed_size)))
    params["embed_w"] = embed_w_t.astype(jnp.bfloat16)           # (2048, Ep)
    params["embed_b"] = jnp.pad(embed_b, (0, Ep - embed_size)) \
        .reshape(1, Ep).astype(jnp.float32)
    params["embed_size"] = embed_size
    return params


# ----------------------------------------------------------------------------
# Forward pass (mirrors EncoderCNN.forward)
# ----------------------------------------------------------------------------
def encoder_forward(params, images_nchw):
    x = jnp.transpose(images_nchw, (0, 2, 3, 1)).astype(jnp.bfloat16)  # NHWC
    # stem: conv7x7/2 + BN + ReLU, maxpool3x3/2
    x = conv_bn(x, params["stem"], stride=2, pad=3, relu=True)
    x = maxpool2d(x, 3, 2, 1)
    # 4 stages of bottleneck blocks
    for blocks in params["layers"]:
        for blk in blocks:
            identity = x
            s = blk["stride"]
            y = conv_bn(x, blk["conv1"], stride=1, pad=0, relu=True)
            y = conv_bn(y, blk["conv2"], stride=s, pad=1, relu=True)
            if "downsample" in blk:
                identity = conv_bn(x, blk["downsample"], stride=s, pad=0,
                                   relu=False)
            # conv3 + BN, add residual, ReLU — all fused in one kernel
            x = conv_bn(y, blk["conv3"], stride=1, pad=0, relu=True,
                        residual=identity)
    # global avg pool + flatten + Linear(2048, embed_size)
    return avgpool_embed(x, params["embed_w"], params["embed_b"],
                         params["embed_size"])


if __name__ == "__main__":
    key = jax.random.PRNGKey(0)
    pkey, xkey = jax.random.split(key)
    params = init_encoder_params(pkey, EMBED_SIZE)
    # NCHW, 3 channels, 64x64 spatial (divides cleanly through the /32 stride)
    images = jax.random.normal(xkey, (2, 3, 64, 64), jnp.float32)
    feats = encoder_forward(params, images)
    feats = jax.block_until_ready(feats)
    assert feats.shape == (2, EMBED_SIZE), feats.shape
    assert bool(jnp.all(jnp.isfinite(feats)))
    print("KERNEL_OK")
</pallas_src>

<mosaic_0001>
module attributes {stable_mosaic.version = 11 : i64} {
  func.func @_fused_matmul_kernel(%arg0: i32, %arg1: i32, %arg2: memref<1024x256xbf16, #tpu.memory_space<vmem>>, %arg3: memref<256x128xbf16, #tpu.memory_space<vmem>>, %arg4: memref<1x128xf32, #tpu.memory_space<vmem>>, %arg5: memref<1x128xf32, #tpu.memory_space<vmem>>, %arg6: memref<1024x128xbf16, #tpu.memory_space<vmem>>) attributes {dimension_semantics = [#tpu.dimension_semantics<parallel>, #tpu.dimension_semantics<parallel>], iteration_bounds = array<i64: 2, 1>, scalar_prefetch = 0 : i64, scratch_operands = 0 : i64, tpu.core_type = #tpu.core_type<tc>, window_params = [{transform_indices = @transform_0, window_bounds = array<i64: 1024, 256>}, {transform_indices = @transform_1, window_bounds = array<i64: 256, 128>}, {transform_indices = @transform_2, window_bounds = array<i64: 1, 128>}, {transform_indices = @transform_3, window_bounds = array<i64: 1, 128>}, {transform_indices = @transform_4, window_bounds = array<i64: 1024, 128>}]} {
    %c0 = arith.constant 0 : index
    %c0_0 = arith.constant 0 : index
    %0 = vector.load %arg2[%c0, %c0_0] : memref<1024x256xbf16, #tpu.memory_space<vmem>>, vector<1024x256xbf16>
    %c0_1 = arith.constant 0 : index
    %c0_2 = arith.constant 0 : index
    %1 = vector.load %arg3[%c0_1, %c0_2] : memref<256x128xbf16, #tpu.memory_space<vmem>>, vector<256x128xbf16>
    %cst = arith.constant dense<0.000000e+00> : vector<1024x128xf32>
    %2 = tpu.matmul %0, %1, %cst {dimension_numbers = #tpu.dot_dimension_numbers<[1], [0], [0], [1], [0, 0, 1, 1], [], []>} : vector<1024x256xbf16>, vector<256x128xbf16>, vector<1024x128xf32> -> vector<1024x128xf32>
    %c0_3 = arith.constant 0 : index
    %c0_4 = arith.constant 0 : index
    %3 = vector.load %arg4[%c0_3, %c0_4] : memref<1x128xf32, #tpu.memory_space<vmem>>, vector<1x128xf32>
    %4 = vector.broadcast %3 : vector<1x128xf32> to vector<1024x128xf32>
    %5 = arith.mulf %2, %4 : vector<1024x128xf32>
    %c0_5 = arith.constant 0 : index
    %c0_6 = arith.constant 0 : index
    %6 = vector.load %arg5[%c0_5, %c0_6] : memref<1x128xf32, #tpu.memory_space<vmem>>, vector<1x128xf32>
    %7 = vector.broadcast %6 : vector<1x128xf32> to vector<1024x128xf32>
    %8 = arith.addf %5, %7 : vector<1024x128xf32>
    %cst_7 = arith.constant 0.000000e+00 : f32
    %9 = vector.broadcast %cst_7 : f32 to vector<1024x128xf32>
    %10 = arith.maximumf %8, %9 : vector<1024x128xf32>
    %11 = arith.truncf %10 : vector<1024x128xf32> to vector<1024x128xbf16>
    %c0_8 = arith.constant 0 : index
    %c0_9 = arith.constant 0 : index
    %12 = vector.load %arg6[%c0_8, %c0_9] : memref<1024x128xbf16, #tpu.memory_space<vmem>>, vector<1024x128xbf16>
    tpu.vector_store %arg6[%c0_8, %c0_9], %11 {strides = array<i32>} : memref<1024x128xbf16, #tpu.memory_space<vmem>>, vector<1024x128xbf16>,
    return
  }
  func.func @transform_0(%arg0: i32, %arg1: i32) -> (i32, i32) {
    %c0_i32 = arith.constant 0 : i32
    %c0_i32_0 = arith.constant 0 : i32
    return %arg0, %c0_i32 : i32, i32
  }
  func.func @transform_1(%arg0: i32, %arg1: i32) -> (i32, i32) {
    %c0_i32 = arith.constant 0 : i32
    %c0_i32_0 = arith.constant 0 : i32
    return %c0_i32, %arg1 : i32, i32
  }
  func.func @transform_2(%arg0: i32, %arg1: i32) -> (i32, i32) {
    %c0_i32 = arith.constant 0 : i32
    %c0_i32_0 = arith.constant 0 : i32
    return %c0_i32, %arg1 : i32, i32
  }
  func.func @transform_3(%arg0: i32, %arg1: i32) -> (i32, i32) {
    %c0_i32 = arith.constant 0 : i32
    %c0_i32_0 = arith.constant 0 : i32
    return %c0_i32, %arg1 : i32, i32
  }
  func.func @transform_4(%arg0: i32, %arg1: i32) -> (i32, i32) {
    %c0_i32 = arith.constant 0 : i32
    return %arg0, %arg1 : i32, i32
  }
}

</mosaic_0001>

<llo_original>
// kernel: tpu_custom_call.1
$region0: #{tpu_custom_call.1}
  #allocation0 [shape = 'u32[]', space=smem, size = 0x4, offset = 0x4, fixed_abs, tag = 'smem constant byte address 0x4 - core index']
  #allocation1 [shape = 'u32[144,128]{1,0:T(1,128)}', space=vmem, size = 0x12000, scoped, tag = 'internal scratch']
  %s0 = inlined_call_operand.hbm [shape: bf16[2048,256], index: 0, kind: input, shape index: {}]
  %s1 = inlined_call_operand.hbm [shape: bf16[256,128], index: 1, kind: input, shape index: {}]
  %s2 = inlined_call_operand.vmem [shape: f32[1,128], index: 2, kind: input, shape index: {}]
  %s3 = inlined_call_operand.vmem [shape: f32[1,128], index: 3, kind: input, shape index: {}]
  %s4 = inlined_call_operand.hbm [shape: bf16[2048,128], index: 4, kind: output, shape index: {}]
  %s5 = sld [smem:[#allocation0]]
  $region57: #{tpu_custom_call.1} parent=0
    _
  %s7 = ssub.s32 1, %s5
  %s8 = scalar_select 0, %s7, %s5
  $region1: #{tpu_custom_call.1} parent=0
    #allocation2 [shape = 'u8[1048576]{0}', space=vmem, size = 0x100000, scoped, tag = 'input window, operand 0']
    #allocation3 [shape = 's32[2]{0}', space=sflag, size = 0x8, scoped, tag = 'scoped memory for tpu_custom_call.1']
    #allocation4 [shape = 's32[2]{0}', space=sflag, size = 0x8, scoped, tag = 'scoped memory for tpu_custom_call.1']
    #allocation5 [shape = 'u8[65536]{0}', space=vmem, size = 0x10000, scoped, tag = 'input window, operand 1, single buffered']
    #allocation6 [shape = 's32[1]{0}', space=sflag, size = 0x4, scoped, tag = 'scoped memory for tpu_custom_call.1']
    #allocation7 [shape = 'u8[524288]{0}', space=vmem, size = 0x80000, scoped, tag = 'output window, operand 0']
    %9 = vsyncpa [#allocation3], 0
    %s10 = scalar_lea.sflag [#allocation3], 1
    %11 = vsyncpa %s10, 0
    %12 = vsyncpa [#allocation6], 0
    %13 = vsyncpa [#allocation4], 0
    %s14 = scalar_lea.sflag [#allocation4], 1
    %15 = vsyncpa %s14, 0
    loop: start=0, step=1, limit=4
    $region2: #{tpu_custom_call.1} parent=1 // loop_pre_header
      _
    $region3: #{tpu_custom_call.1} parent=1 // loop_header
      %s17 = sphi 0, %s21
      %p18 = scmp.ge.s32.totalorder %s17, 4
      %s24 = sphi 0, %s36
      %s25 = sphi 0, %s32
      %s26 = sphi 0, %s24
      %s27 = sphi 0, %s25
      %s28 = sphi 0, %s26
      %s29 = sphi 0, %s27
      %s39 = sphi 0, %s41
      %s42 = sphi 0, %s39
      %s43 = sphi 0, %s42
      %s59 = sphi 0, %s43
      %s65 = sphi 0, %s67
      %s68 = sphi 0, %s65
      %s69 = sphi 0, %s68
      %s85 = sphi 0, %s69
      %s91 = sphi 0, %s93
      %s94 = sphi 0, %s91
      %s95 = sphi 0, %s94
      %s111 = sphi 0, %s95
      %s117 = sphi 0, %s119
      %s120 = sphi 0, %s117
      %s121 = sphi 0, %s120
      %s137 = sphi 0, %s121
      %s145 = sphi 0, %s147
      %s148 = sphi 0, %s145
      %s149 = sphi 0, %s148
      %s165 = sphi 0, %s149
    $region4: #{tpu_custom_call.1} parent=1 // loop_header_branch
      %20 = sbr.rel (%p18) target = $region8
    $region5: #{tpu_custom_call.1} parent=1 // loop_body
      %s22 = ssub.s32 %s17, 1
      %s23 = ssub.s32 %s17, 2
      %s30 = sadd.s32 1, %s25
      %p31 = scmp.ge.s32.totalorder %s30, 1
      %s32 = scalar_select %p31, 0, %s30
      %s33 = sadd.s32 1, %s24
      %s34 = scalar_select %p31, %s33, %s24
      %p35 = scmp.ge.s32.totalorder %s34, 2
      %s36 = scalar_select %p35, 0, %s34
      %s37 = ssub.s32 %s24, %s36
      %p38 = scmp.eq.s32.totalorder %s37, 0
      %s40 = sadd.s32 %s39, 1
      %s41 = scalar_select %p38, %s39, %s40
      %p44 = pneg %p38
      %p45 = scmp.eq.s32.totalorder %s17, 1
      %p46 = por %p44, %p45
      %p47 = scmp.ne.s32.totalorder %s39, %s42
      %p48 = scmp.eq.s32.totalorder %s17, 0
      %p49 = por %p47, %p48
      %p50 = scmp.ne.s32.totalorder %s39, %s42
      %p51 = scmp.eq.s32.totalorder %s22, 1
      %p52 = por %p50, %p51
      %p53 = scmp.ne.s32.totalorder %s42, %s43
      %p54 = scmp.eq.s32.totalorder %s22, 0
      %p55 = por %p53, %p54
      %p56 = scmp.ne.s32.totalorder %s42, %s43
      %p57 = scmp.eq.s32.totalorder %s23, 1
      %p58 = por %p56, %p57
      %p60 = scmp.ne.s32.totalorder %s43, %s59
      %p61 = scmp.eq.s32.totalorder %s23, 0
      %p62 = por %p60, %p61
      %s63 = ssub.s32 %s25, %s32
      %p64 = scmp.eq.s32.totalorder %s63, 0
      %s66 = sadd.s32 %s65, 1
      %s67 = scalar_select %p64, %s65, %s66
      %p70 = pneg %p64
      %p71 = scmp.eq.s32.totalorder %s17, 1
      %p72 = por %p70, %p71
      %p73 = scmp.ne.s32.totalorder %s65, %s68
      %p74 = scmp.eq.s32.totalorder %s17, 0
      %p75 = por %p73, %p74
      %p76 = scmp.ne.s32.totalorder %s65, %s68
      %p77 = scmp.eq.s32.totalorder %s22, 1
      %p78 = por %p76, %p77
      %p79 = scmp.ne.s32.totalorder %s68, %s69
      %p80 = scmp.eq.s32.totalorder %s22, 0
      %p81 = por %p79, %p80
      %p82 = scmp.ne.s32.totalorder %s68, %s69
      %p83 = scmp.eq.s32.totalorder %s23, 1
      %p84 = por %p82, %p83
      %p86 = scmp.ne.s32.totalorder %s69, %s85
      %p87 = scmp.eq.s32.totalorder %s23, 0
      %p88 = por %p86, %p87
      %s89 = ssub.s32 %s25, %s32
      %p90 = scmp.eq.s32.totalorder %s89, 0
      %s92 = sadd.s32 %s91, 1
      %s93 = scalar_select %p90, %s91, %s92
      %p96 = pneg %p90
      %p97 = scmp.eq.s32.totalorder %s17, 1
      %p98 = por %p96, %p97
      %p99 = scmp.ne.s32.totalorder %s91, %s94
      %p100 = scmp.eq.s32.totalorder %s17, 0
      %p101 = por %p99, %p100
      %p102 = scmp.ne.s32.totalorder %s91, %s94
      %p103 = scmp.eq.s32.totalorder %s22, 1
      %p104 = por %p102, %p103
      %p105 = scmp.ne.s32.totalorder %s94, %s95
      %p106 = scmp.eq.s32.totalorder %s22, 0
      %p107 = por %p105, %p106
      %p108 = scmp.ne.s32.totalorder %s94, %s95
      %p109 = scmp.eq.s32.totalorder %s23, 1
      %p110 = por %p108, %p109
      %p112 = scmp.ne.s32.totalorder %s95, %s111
      %p113 = scmp.eq.s32.totalorder %s23, 0
      %p114 = por %p112, %p113
      %s115 = ssub.s32 %s25, %s32
      %p116 = scmp.eq.s32.totalorder %s115, 0
      %s118 = sadd.s32 %s117, 1
      %s119 = scalar_select %p116, %s117, %s118
      %p122 = pneg %p116
      %p123 = scmp.eq.s32.totalorder %s17, 1
      %p124 = por %p122, %p123
      %p125 = scmp.ne.s32.totalorder %s117, %s120
      %p126 = scmp.eq.s32.totalorder %s17, 0
      %p127 = por %p125, %p126
      %p128 = scmp.ne.s32.totalorder %s117, %s120
      %p129 = scmp.eq.s32.totalorder %s22, 1
      %p130 = por %p128, %p129
      %p131 = scmp.ne.s32.totalorder %s120, %s121
      %p132 = scmp.eq.s32.totalorder %s22, 0
      %p133 = por %p131, %p132
      %p134 = scmp.ne.s32.totalorder %s120, %s121
      %p135 = scmp.eq.s32.totalorder %s23, 1
      %p136 = por %p134, %p135
      %p138 = scmp.ne.s32.totalorder %s121, %s137
      %p139 = scmp.eq.s32.totalorder %s23, 0
      %p140 = por %p138, %p139
      %s141 = ssub.s32 %s24, %s36
      %s142 = ssub.s32 %s25, %s32
      %s143 = sor.u32 %s141, %s142
      %p144 = scmp.eq.s32.totalorder %s143, 0
      %s146 = sadd.s32 %s145, 1
      %s147 = scalar_select %p144, %s145, %s146
      %p150 = pneg %p144
      %p151 = scmp.eq.s32.totalorder %s17, 1
      %p152 = por %p150, %p151
      %p153 = scmp.ne.s32.totalorder %s145, %s148
      %p154 = scmp.eq.s32.totalorder %s17, 0
      %p155 = por %p153, %p154
      %p156 = scmp.ne.s32.totalorder %s145, %s148
      %p157 = scmp.eq.s32.totalorder %s22, 1
      %p158 = por %p156, %p157
      %p159 = scmp.ne.s32.totalorder %s148, %s149
      %p160 = scmp.eq.s32.totalorder %s22, 0
      %p161 = por %p159, %p160
      %p162 = scmp.ne.s32.totalorder %s148, %s149
      %p163 = scmp.eq.s32.totalorder %s23, 1
      %p164 = por %p162, %p163
      %p166 = scmp.ne.s32.totalorder %s149, %s165
      %p167 = scmp.eq.s32.totalorder %s23, 0
      %p168 = por %p166, %p167
      %p169 = scmp.le.s32.totalorder 1, %s17
      %p170 = scmp.lt.s32.totalorder %s17, 3
      %p171 = pnand %p169, %p170
      %p172 = pneg %p171
      // Predicated region
      $region9: #{tpu_custom_call.1} parent=5 // pred_check
        _
      $region10: #{tpu_custom_call.1} parent=5 // pred_check_branch
        %174 = sbr.rel (%p171) target = $region12
      $region11: #{tpu_custom_call.1} parent=5 // pred_region
        %s175 = ssub.s32 %s17, 1
        // Predicated region
        $region13: #{tpu_custom_call.1} parent=11 // pred_check
          %p176 = pneg %p81
        $region14: #{tpu_custom_call.1} parent=11 // pred_check_branch
          %178 = sbr.rel (%p176) target = $region16
        $region15: #{tpu_custom_call.1} parent=11 // pred_region
          %s180 = ssub.s32 2048, 2048
          %181 = vsyncadd [#allocation6], %s180
          %s182 = smul.addr %s27, 64
          %s183 = scalar_lea.hbm %s1, %s182
          %s184 = sshll.u32 [#allocation5], 4
          %s185 = int_to_ptr.vmem [resolvable:$true] %s184
          %190 = dma.hbm_to_vmem [thread:$0]  %s183, 2048, %s185, [#allocation6], 64, 64, 4
        $region16: #{tpu_custom_call.1} parent=11 // pred_fallthru
          _
        // Predicated region
        $region17: #{tpu_custom_call.1} parent=11 // pred_check
          %p191 = pneg %p107
        $region18: #{tpu_custom_call.1} parent=11 // pred_check_branch
          %193 = sbr.rel (%p191) target = $region20
        $region19: #{tpu_custom_call.1} parent=11 // pred_region
          %p194 = scmp.lt.s32.totalorder %s27, 0
          %s195 = scalar_select %p194, %s27, 0
          %s196 = scalar_lea.vmem %s2, %s195
        $region20: #{tpu_custom_call.1} parent=11 // pred_fallthru
          _
        // Predicated region
        $region21: #{tpu_custom_call.1} parent=11 // pred_check
          %p197 = pneg %p133
        $region22: #{tpu_custom_call.1} parent=11 // pred_check_branch
          %199 = sbr.rel (%p197) target = $region24
        $region23: #{tpu_custom_call.1} parent=11 // pred_region
          %p200 = scmp.lt.s32.totalorder %s27, 0
          %s201 = scalar_select %p200, %s27, 0
          %s202 = scalar_lea.vmem %s3, %s201
        $region24: #{tpu_custom_call.1} parent=11 // pred_fallthru
          _
      $region12: #{tpu_custom_call.1} parent=5 // pred_fallthru
        _
      %p203 = scmp.lt.s32.totalorder %s17, 2
      // Predicated region
      $region25: #{tpu_custom_call.1} parent=5 // pred_check
        %p204 = pneg %p203
      $region26: #{tpu_custom_call.1} parent=5 // pred_check_branch
        %206 = sbr.rel (%p204) target = $region28
      $region27: #{tpu_custom_call.1} parent=5 // pred_region
        // Predicated region
        $region29: #{tpu_custom_call.1} parent=27 // pred_check
          %p207 = pneg %p49
        $region30: #{tpu_custom_call.1} parent=27 // pred_check_branch
          %209 = sbr.rel (%p207) target = $region32
        $region31: #{tpu_custom_call.1} parent=27 // pred_region
          %s210 = sand.u32 %s39, 1
          %s211 = scalar_lea.sflag [#allocation3], %s210
          %s212 = sand.u32 %s39, 1
          %s213 = smul.addr %s212, 1024
          %s214 = scalar_lea.vmem [#allocation2], %s213
          %s215 = smul.u32 128, %s24
          %s217 = ssub.s32 16384, 16384
          %218 = vsyncadd %s211, %s217
          %s219 = smul.addr %s215, 2
          %s220 = smul.addr %s219, 64
          %s221 = scalar_lea.hbm %s0, %s220
          %s222 = sshll.u32 %s214, 4
          %s223 = int_to_ptr.vmem [resolvable:$true] %s222
          %228 = dma.hbm_to_vmem [thread:$0]  %s221, 16384, %s223, %s211, 128, 128, 8
        $region32: #{tpu_custom_call.1} parent=27 // pred_fallthru
          _
      $region28: #{tpu_custom_call.1} parent=5 // pred_fallthru
        _
      %p229 = scmp.le.s32.totalorder 1, %s17
      %p230 = scmp.lt.s32.totalorder %s17, 3
      %p231 = pnand %p229, %p230
      %p232 = pneg %p231
      // Predicated region
      $region33: #{tpu_custom_call.1} parent=5 // pred_check
        _
      $region34: #{tpu_custom_call.1} parent=5 // pred_check_branch
        %234 = sbr.rel (%p231) target = $region36
      $region35: #{tpu_custom_call.1} parent=5 // pred_region
        %s235 = ssub.s32 %s17, 1
        %s236 = sand.u32 %s42, 1
        %s237 = scalar_lea.sflag [#allocation3], %s236
        %s238 = sand.u32 %s42, 1
        %s239 = smul.addr %s238, 1024
        %s240 = scalar_lea.vmem [#allocation2], %s239
        // Predicated region
        $region37: #{tpu_custom_call.1} parent=35 // pred_check
          %p241 = pneg %p55
        $region38: #{tpu_custom_call.1} parent=35 // pred_check_branch
          %243 = sbr.rel (%p241) target = $region40
        $region39: #{tpu_custom_call.1} parent=35 // pred_region
          %244 = dma.done %s237, 16384
        $region40: #{tpu_custom_call.1} parent=35 // pred_fallthru
          _
        // Predicated region
        $region41: #{tpu_custom_call.1} parent=35 // pred_check
          %p245 = pneg %p81
        $region42: #{tpu_custom_call.1} parent=35 // pred_check_branch
          %247 = sbr.rel (%p245) target = $region44
        $region43: #{tpu_custom_call.1} parent=35 // pred_region
          %248 = dma.done [#allocation6], 2048
        $region44: #{tpu_custom_call.1} parent=35 // pred_fallthru
          _
        %s249 = sand.u32 %s42, 1
        %s250 = scalar_lea.sflag [#allocation3], %s249
        %s251 = sand.u32 %s42, 1
        %s252 = smul.addr %s251, 1024
        %s253 = scalar_lea.vmem [#allocation2], %s252
        %p254 = pneg %p55
        %p255 = pneg %p52
        %p256 = pneg %p81
        %p257 = pneg %p78
        %p258 = scmp.lt.s32.totalorder %s27, 0
        %s259 = scalar_select %p258, %s27, 0
        %s260 = scalar_lea.vmem %s2, %s259
        %p261 = pneg %p107
        %p262 = pneg %p104
        %p263 = scmp.lt.s32.totalorder %s27, 0
        %s264 = scalar_select %p263, %s27, 0
        %s265 = scalar_lea.vmem %s3, %s264
        %p266 = pneg %p133
        %p267 = pneg %p130
        %p268 = pneg %p161
        %p269 = pneg %p158
        %s270 = sand.u32 %s148, 1
        %s271 = scalar_lea.sflag [#allocation4], %s270
        %s272 = sand.u32 %s148, 1
        %s273 = smul.addr %s272, 512
        %s274 = scalar_lea.vmem [#allocation7], %s273
        %s275 = smul.u32 128, %s26
        %p276 = scmp.lt.s32.totalorder %s27, 0
        %s277 = scalar_select %p276, %s27, 0
        %s278 = scalar_lea.vmem %s2, %s277
        %p279 = scmp.lt.s32.totalorder %s27, 0
        %s280 = scalar_select %p279, %s27, 0
        %s281 = scalar_lea.vmem %s3, %s280
        %s282 = smul.u32 128, %s26
        %v284 = vld [vmem:[%s240] sm:$0xff]
        %v285 = vld [vmem:[%s240 + $0x8] sm:$0xff]
        %v286 = vld [vmem:[%s240 + $0x10] sm:$0xff]
        %v287 = vld [vmem:[%s240 + $0x18] sm:$0xff]
        %v288 = vld [vmem:[%s240 + $0x20] sm:$0xff]
        %v289 = vld [vmem:[%s240 + $0x28] sm:$0xff]
        %v290 = vld [vmem:[%s240 + $0x30] sm:$0xff]
        %v291 = vld [vmem:[%s240 + $0x38] sm:$0xff]
        %v292 = vld [vmem:[%s240 + $0x40] sm:$0xff]
        %v293 = vld [vmem:[%s240 + $0x48] sm:$0xff]
        %v294 = vld [vmem:[%s240 + $0x50] sm:$0xff]
        %v295 = vld [vmem:[%s240 + $0x58] sm:$0xff]
        %v296 = vld [vmem:[%s240 + $0x60] sm:$0xff]
        %v297 = vld [vmem:[%s240 + $0x68] sm:$0xff]
        %v298 = vld [vmem:[%s240 + $0x70] sm:$0xff]
        %v299 = vld [vmem:[%s240 + $0x78] sm:$0xff]
        %v300 = vld [vmem:[%s240 + $0x80] sm:$0xff]
        %v301 = vld [vmem:[%s240 + $0x88] sm:$0xff]
        %v302 = vld [vmem:[%s240 + $0x90] sm:$0xff]
        %v303 = vld [vmem:[%s240 + $0x98] sm:$0xff]
        %v304 = vld [vmem:[%s240 + $0xa0] sm:$0xff]
        %v305 = vld [vmem:[%s240 + $0xa8] sm:$0xff]
        %v306 = vld [vmem:[%s240 + $0xb0] sm:$0xff]
        %v307 = vld [vmem:[%s240 + $0xb8] sm:$0xff]
        %v308 = vld [vmem:[%s240 + $0xc0] sm:$0xff]
        %v309 = vld [vmem:[%s240 + $0xc8] sm:$0xff]
        %v310 = vld [vmem:[%s240 + $0xd0] sm:$0xff]
        %v311 = vld [vmem:[%s240 + $0xd8] sm:$0xff]
        %v312 = vld [vmem:[%s240 + $0xe0] sm:$0xff]
        %v313 = vld [vmem:[%s240 + $0xe8] sm:$0xff]
        %v314 = vld [vmem:[%s240 + $0xf0] sm:$0xff]
        %v315 = vld [vmem:[%s240 + $0xf8] sm:$0xff]
        %v316 = vld [vmem:[%s240 + $0x100] sm:$0xff]
        %v317 = vld [vmem:[%s240 + $0x108] sm:$0xff]
        %v318 = vld [vmem:[%s240 + $0x110] sm:$0xff]
        %v319 = vld [vmem:[%s240 + $0x118] sm:$0xff]
        %v320 = vld [vmem:[%s240 + $0x120] sm:$0xff]
        %v321 = vld [vmem:[%s240 + $0x128] sm:$0xff]
        %v322 = vld [vmem:[%s240 + $0x130] sm:$0xff]
        %v323 = vld [vmem:[%s240 + $0x138] sm:$0xff]
        %v324 = vld [vmem:[%s240 + $0x140] sm:$0xff]
        %v325 = vld [vmem:[%s240 + $0x148] sm:$0xff]
        %v326 = vld [vmem:[%s240 + $0x150] sm:$0xff]
        %v327 = vld [vmem:[%s240 + $0x158] sm:$0xff]
        %v328 = vld [vmem:[%s240 + $0x160] sm:$0xff]
        %v329 = vld [vmem:[%s240 + $0x168] sm:$0xff]
        %v330 = vld [vmem:[%s240 + $0x170] sm:$0xff]
        %v331 = vld [vmem:[%s240 + $0x178] sm:$0xff]
        %v332 = vld [vmem:[%s240 + $0x180] sm:$0xff]
        %v333 = vld [vmem:[%s240 + $0x188] sm:$0xff]
        %v334 = vld [vmem:[%s240 + $0x190] sm:$0xff]
        %v335 = vld [vmem:[%s240 + $0x198] sm:$0xff]
        %v336 = vld [vmem:[%s240 + $0x1a0] sm:$0xff]
        %v337 = vld [vmem:[%s240 + $0x1a8] sm:$0xff]
        %v338 = vld [vmem:[%s240 + $0x1b0] sm:$0xff]
        %v339 = vld [vmem:[%s240 + $0x1b8] sm:$0xff]
        %v340 = vld [vmem:[%s240 + $0x1c0] sm:$0xff]
        %v341 = vld [vmem:[%s240 + $0x1c8] sm:$0xff]
        %v342 = vld [vmem:[%s240 + $0x1d0] sm:$0xff]
        %v343 = vld [vmem:[%s240 + $0x1d8] sm:$0xff]
        %v344 = vld [vmem:[%s240 + $0x1e0] sm:$0xff]
        %v345 = vld [vmem:[%s240 + $0x1e8] sm:$0xff]
        %v346 = vld [vmem:[%s240 + $0x1f0] sm:$0xff]
        %v347 = vld [vmem:[%s240 + $0x1f8] sm:$0xff]
        %v348 = vld [vmem:[%s240 + $0x200] sm:$0xff]
        %v349 = vld [vmem:[%s240 + $0x208] sm:$0xff]
        %v350 = vld [vmem:[%s240 + $0x210] sm:$0xff]
        %v351 = vld [vmem:[%s240 + $0x218] sm:$0xff]
        %v352 = vld [vmem:[%s240 + $0x220] sm:$0xff]
        %v353 = vld [vmem:[%s240 + $0x228] sm:$0xff]
        %v354 = vld [vmem:[%s240 + $0x230] sm:$0xff]
        %v355 = vld [vmem:[%s240 + $0x238] sm:$0xff]
        %v356 = vld [vmem:[%s240 + $0x240] sm:$0xff]
        %v357 = vld [vmem:[%s240 + $0x248] sm:$0xff]
        %v358 = vld [vmem:[%s240 + $0x250] sm:$0xff]
        %v359 = vld [vmem:[%s240 + $0x258] sm:$0xff]
        %v360 = vld [vmem:[%s240 + $0x260] sm:$0xff]
        %v361 = vld [vmem:[%s240 + $0x268] sm:$0xff]
        %v362 = vld [vmem:[%s240 + $0x270] sm:$0xff]
        %v363 = vld [vmem:[%s240 + $0x278] sm:$0xff]
        %v364 = vld [vmem:[%s240 + $0x280] sm:$0xff]
        %v365 = vld [vmem:[%s240 + $0x288] sm:$0xff]
        %v366 = vld [vmem:[%s240 + $0x290] sm:$0xff]
        %v367 = vld [vmem:[%s240 + $0x298] sm:$0xff]
        %v368 = vld [vmem:[%s240 + $0x2a0] sm:$0xff]
        %v369 = vld [vmem:[%s240 + $0x2a8] sm:$0xff]
        %v370 = vld [vmem:[%s240 + $0x2b0] sm:$0xff]
        %v371 = vld [vmem:[%s240 + $0x2b8] sm:$0xff]
        %v372 = vld [vmem:[%s240 + $0x2c0] sm:$0xff]
        %v373 = vld [vmem:[%s240 + $0x2c8] sm:$0xff]
        %v374 = vld [vmem:[%s240 + $0x2d0] sm:$0xff]
        %v375 = vld [vmem:[%s240 + $0x2d8] sm:$0xff]
        %v376 = vld [vmem:[%s240 + $0x2e0] sm:$0xff]
        %v377 = vld [vmem:[%s240 + $0x2e8] sm:$0xff]
        %v378 = vld [vmem:[%s240 + $0x2f0] sm:$0xff]
        %v379 = vld [vmem:[%s240 + $0x2f8] sm:$0xff]
        %v380 = vld [vmem:[%s240 + $0x300] sm:$0xff]
        %v381 = vld [vmem:[%s240 + $0x308] sm:$0xff]
        %v382 = vld [vmem:[%s240 + $0x310] sm:$0xff]
        %v383 = vld [vmem:[%s240 + $0x318] sm:$0xff]
        %v384 = vld [vmem:[%s240 + $0x320] sm:$0xff]
        %v385 = vld [vmem:[%s240 + $0x328] sm:$0xff]
        %v386 = vld [vmem:[%s240 + $0x330] sm:$0xff]
        %v387 = vld [vmem:[%s240 + $0x338] sm:$0xff]
        %v388 = vld [vmem:[%s240 + $0x340] sm:$0xff]
        %v389 = vld [vmem:[%s240 + $0x348] sm:$0xff]
        %v390 = vld [vmem:[%s240 + $0x350] sm:$0xff]
        %v391 = vld [vmem:[%s240 + $0x358] sm:$0xff]
        %v392 = vld [vmem:[%s240 + $0x360] sm:$0xff]
        %v393 = vld [vmem:[%s240 + $0x368] sm:$0xff]
        %v394 = vld [vmem:[%s240 + $0x370] sm:$0xff]
        %v395 = vld [vmem:[%s240 + $0x378] sm:$0xff]
        %v396 = vld [vmem:[%s240 + $0x380] sm:$0xff]
        %v397 = vld [vmem:[%s240 + $0x388] sm:$0xff]
        %v398 = vld [vmem:[%s240 + $0x390] sm:$0xff]
        %v399 = vld [vmem:[%s240 + $0x398] sm:$0xff]
        %v400 = vld [vmem:[%s240 + $0x3a0] sm:$0xff]
        %v401 = vld [vmem:[%s240 + $0x3a8] sm:$0xff]
        %v402 = vld [vmem:[%s240 + $0x3b0] sm:$0xff]
        %v403 = vld [vmem:[%s240 + $0x3b8] sm:$0xff]
        %v404 = vld [vmem:[%s240 + $0x3c0] sm:$0xff]
        %v405 = vld [vmem:[%s240 + $0x3c8] sm:$0xff]
        %v406 = vld [vmem:[%s240 + $0x3d0] sm:$0xff]
        %v407 = vld [vmem:[%s240 + $0x3d8] sm:$0xff]
        %v408 = vld [vmem:[%s240 + $0x3e0] sm:$0xff]
        %v409 = vld [vmem:[%s240 + $0x3e8] sm:$0xff]
        %v410 = vld [vmem:[%s240 + $0x3f0] sm:$0xff]
        %v411 = vld [vmem:[%s240 + $0x3f8] sm:$0xff]
        %v412 = vld [vmem:[#allocation5] sm:$0xf]
        %v413 = vld [vmem:[#allocation5 + $0x4] sm:$0xf]
        %v414 = vld [vmem:[#allocation5 + $0x8] sm:$0xf]
        %v415 = vld [vmem:[#allocation5 + $0xc] sm:$0xf]
        %v416 = vld [vmem:[#allocation5 + $0x10] sm:$0xf]
        %v417 = vld [vmem:[#allocation5 + $0x14] sm:$0xf]
        %v418 = vld [vmem:[#allocation5 + $0x18] sm:$0xf]
        %v419 = vld [vmem:[#allocation5 + $0x1c] sm:$0xf]
        %v420 = vld [vmem:[#allocation5 + $0x20] sm:$0xf]
        %v421 = vld [vmem:[#allocation5 + $0x24] sm:$0xf]
        %v422 = vld [vmem:[#allocation5 + $0x28] sm:$0xf]
        %v423 = vld [vmem:[#allocation5 + $0x2c] sm:$0xf]
        %v424 = vld [vmem:[#allocation5 + $0x30] sm:$0xf]
        %v425 = vld [vmem:[#allocation5 + $0x34] sm:$0xf]
        %v426 = vld [vmem:[#allocation5 + $0x38] sm:$0xf]
        %v427 = vld [vmem:[#allocation5 + $0x3c] sm:$0xf]
        %v428 = vld [vmem:[#allocation5 + $0x40] sm:$0xf]
        %v429 = vld [vmem:[#allocation5 + $0x44] sm:$0xf]
        %v430 = vld [vmem:[#allocation5 + $0x48] sm:$0xf]
        %v431 = vld [vmem:[#allocation5 + $0x4c] sm:$0xf]
        %v432 = vld [vmem:[#allocation5 + $0x50] sm:$0xf]
        %v433 = vld [vmem:[#allocation5 + $0x54] sm:$0xf]
        %v434 = vld [vmem:[#allocation5 + $0x58] sm:$0xf]
        %v435 = vld [vmem:[#allocation5 + $0x5c] sm:$0xf]
        %v436 = vld [vmem:[#allocation5 + $0x60] sm:$0xf]
        %v437 = vld [vmem:[#allocation5 + $0x64] sm:$0xf]
        %v438 = vld [vmem:[#allocation5 + $0x68] sm:$0xf]
        %v439 = vld [vmem:[#allocation5 + $0x6c] sm:$0xf]
        %v440 = vld [vmem:[#allocation5 + $0x70] sm:$0xf]
        %v441 = vld [vmem:[#allocation5 + $0x74] sm:$0xf]
        %v442 = vld [vmem:[#allocation5 + $0x78] sm:$0xf]
        %v443 = vld [vmem:[#allocation5 + $0x7c] sm:$0xf]
        %v572 = vunpack.c.l.b16 %v284
        %v573 = vunpack.c.h.b16 %v284
        %v574 = vunpack.c.l.b16 %v285
        %v575 = vunpack.c.h.b16 %v285
        %v576 = vunpack.c.l.b16 %v286
        %v577 = vunpack.c.h.b16 %v286
        %v578 = vunpack.c.l.b16 %v287
        %v579 = vunpack.c.h.b16 %v287
        %v580 = vunpack.c.l.b16 %v288
        %v581 = vunpack.c.h.b16 %v288
        %v582 = vunpack.c.l.b16 %v289
        %v583 = vunpack.c.h.b16 %v289
        %v584 = vunpack.c.l.b16 %v290
        %v585 = vunpack.c.h.b16 %v290
        %v586 = vunpack.c.l.b16 %v291
        %v587 = vunpack.c.h.b16 %v291
        %v588 = vunpack.c.l.b16 %v292
        %v589 = vunpack.c.h.b16 %v292
        %v590 = vunpack.c.l.b16 %v293
        %v591 = vunpack.c.h.b16 %v293
        %v592 = vunpack.c.l.b16 %v294
        %v593 = vunpack.c.h.b16 %v294
        %v594 = vunpack.c.l.b16 %v295
        %v595 = vunpack.c.h.b16 %v295
        %v596 = vunpack.c.l.b16 %v296
        %v597 = vunpack.c.h.b16 %v296
        %v598 = vunpack.c.l.b16 %v297
        %v599 = vunpack.c.h.b16 %v297
        %v600 = vunpack.c.l.b16 %v298
        %v601 = vunpack.c.h.b16 %v298
        %v602 = vunpack.c.l.b16 %v299
        %v603 = vunpack.c.h.b16 %v299
        %v604 = vunpack.c.l.b16 %v300
        %v605 = vunpack.c.h.b16 %v300
        %v606 = vunpack.c.l.b16 %v301
        %v607 = vunpack.c.h.b16 %v301
        %v608 = vunpack.c.l.b16 %v302
        %v609 = vunpack.c.h.b16 %v302
        %v610 = vunpack.c.l.b16 %v303
        %v611 = vunpack.c.h.b16 %v303
        %v612 = vunpack.c.l.b16 %v304
        %v613 = vunpack.c.h.b16 %v304
        %v614 = vunpack.c.l.b16 %v305
        %v615 = vunpack.c.h.b16 %v305
        %v616 = vunpack.c.l.b16 %v306
        %v617 = vunpack.c.h.b16 %v306
        %v618 = vunpack.c.l.b16 %v307
        %v619 = vunpack.c.h.b16 %v307
        %v620 = vunpack.c.l.b16 %v308
        %v621 = vunpack.c.h.b16 %v308
        %v622 = vunpack.c.l.b16 %v309
        %v623 = vunpack.c.h.b16 %v309
        %v624 = vunpack.c.l.b16 %v310
        %v625 = vunpack.c.h.b16 %v310
        %v626 = vunpack.c.l.b16 %v311
        %v627 = vunpack.c.h.b16 %v311
        %v628 = vunpack.c.l.b16 %v312
        %v629 = vunpack.c.h.b16 %v312
        %v630 = vunpack.c.l.b16 %v313
        %v631 = vunpack.c.h.b16 %v313
        %v632 = vunpack.c.l.b16 %v314
        %v633 = vunpack.c.h.b16 %v314
        %v634 = vunpack.c.l.b16 %v315
        %v635 = vunpack.c.h.b16 %v315
        %v636 = vunpack.c.l.b16 %v316
        %v637 = vunpack.c.h.b16 %v316
        %v638 = vunpack.c.l.b16 %v317
        %v639 = vunpack.c.h.b16 %v317
        %v640 = vunpack.c.l.b16 %v318
        %v641 = vunpack.c.h.b16 %v318
        %v642 = vunpack.c.l.b16 %v319
        %v643 = vunpack.c.h.b16 %v319
        %v644 = vunpack.c.l.b16 %v320
        %v645 = vunpack.c.h.b16 %v320
        %v646 = vunpack.c.l.b16 %v321
        %v647 = vunpack.c.h.b16 %v321
        %v648 = vunpack.c.l.b16 %v322
        %v649 = vunpack.c.h.b16 %v322
        %v650 = vunpack.c.l.b16 %v323
        %v651 = vunpack.c.h.b16 %v323
        %v652 = vunpack.c.l.b16 %v324
        %v653 = vunpack.c.h.b16 %v324
        %v654 = vunpack.c.l.b16 %v325
        %v655 = vunpack.c.h.b16 %v325
        %v656 = vunpack.c.l.b16 %v326
        %v657 = vunpack.c.h.b16 %v326
        %v658 = vunpack.c.l.b16 %v327
        %v659 = vunpack.c.h.b16 %v327
        %v660 = vunpack.c.l.b16 %v328
        %v661 = vunpack.c.h.b16 %v328
        %v662 = vunpack.c.l.b16 %v329
        %v663 = vunpack.c.h.b16 %v329
        %v664 = vunpack.c.l.b16 %v330
        %v665 = vunpack.c.h.b16 %v330
        %v666 = vunpack.c.l.b16 %v331
        %v667 = vunpack.c.h.b16 %v331
        %v668 = vunpack.c.l.b16 %v332
        %v669 = vunpack.c.h.b16 %v332
        %v670 = vunpack.c.l.b16 %v333
        %v671 = vunpack.c.h.b16 %v333
        %v672 = vunpack.c.l.b16 %v334
        %v673 = vunpack.c.h.b16 %v334
        %v674 = vunpack.c.l.b16 %v335
        %v675 = vunpack.c.h.b16 %v335
        %v676 = vunpack.c.l.b16 %v336
        %v677 = vunpack.c.h.b16 %v336
        %v678 = vunpack.c.l.b16 %v337
        %v679 = vunpack.c.h.b16 %v337
        %v680 = vunpack.c.l.b16 %v338
        %v681 = vunpack.c.h.b16 %v338
        %v682 = vunpack.c.l.b16 %v339
        %v683 = vunpack.c.h.b16 %v339
        %v684 = vunpack.c.l.b16 %v340
        %v685 = vunpack.c.h.b16 %v340
        %v686 = vunpack.c.l.b16 %v341
        %v687 = vunpack.c.h.b16 %v341
        %v688 = vunpack.c.l.b16 %v342
        %v689 = vunpack.c.h.b16 %v342
        %v690 = vunpack.c.l.b16 %v343
        %v691 = vunpack.c.h.b16 %v343
        %v692 = vunpack.c.l.b16 %v344
        %v693 = vunpack.c.h.b16 %v344
        %v694 = vunpack.c.l.b16 %v345
        %v695 = vunpack.c.h.b16 %v345
        %v696 = vunpack.c.l.b16 %v346
        %v697 = vunpack.c.h.b16 %v346
        %v698 = vunpack.c.l.b16 %v347
        %v699 = vunpack.c.h.b16 %v347
        %v700 = vunpack.c.l.b16 %v348
        %v701 = vunpack.c.h.b16 %v348
        %v702 = vunpack.c.l.b16 %v349
        %v703 = vunpack.c.h.b16 %v349
        %v704 = vunpack.c.l.b16 %v350
        %v705 = vunpack.c.h.b16 %v350
        %v706 = vunpack.c.l.b16 %v351
        %v707 = vunpack.c.h.b16 %v351
        %v708 = vunpack.c.l.b16 %v352
        %v709 = vunpack.c.h.b16 %v352
        %v710 = vunpack.c.l.b16 %v353
        %v711 = vunpack.c.h.b16 %v353
        %v712 = vunpack.c.l.b16 %v354
        %v713 = vunpack.c.h.b16 %v354
        %v714 = vunpack.c.l.b16 %v355
        %v715 = vunpack.c.h.b16 %v355
        %v716 = vunpack.c.l.b16 %v356
        %v717 = vunpack.c.h.b16 %v356
        %v718 = vunpack.c.l.b16 %v357
        %v719 = vunpack.c.h.b16 %v357
        %v720 = vunpack.c.l.b16 %v358
        %v721 = vunpack.c.h.b16 %v358
        %v722 = vunpack.c.l.b16 %v359
        %v723 = vunpack.c.h.b16 %v359
        %v724 = vunpack.c.l.b16 %v360
        %v725 = vunpack.c.h.b16 %v360
        %v726 = vunpack.c.l.b16 %v361
        %v727 = vunpack.c.h.b16 %v361
        %v728 = vunpack.c.l.b16 %v362
        %v729 = vunpack.c.h.b16 %v362
        %v730 = vunpack.c.l.b16 %v363
        %v731 = vunpack.c.h.b16 %v363
        %v732 = vunpack.c.l.b16 %v364
        %v733 = vunpack.c.h.b16 %v364
        %v734 = vunpack.c.l.b16 %v365
        %v735 = vunpack.c.h.b16 %v365
        %v736 = vunpack.c.l.b16 %v366
        %v737 = vunpack.c.h.b16 %v366
        %v738 = vunpack.c.l.b16 %v367
        %v739 = vunpack.c.h.b16 %v367
        %v740 = vunpack.c.l.b16 %v368
        %v741 = vunpack.c.h.b16 %v368
        %v742 = vunpack.c.l.b16 %v369
        %v743 = vunpack.c.h.b16 %v369
        %v744 = vunpack.c.l.b16 %v370
        %v745 = vunpack.c.h.b16 %v370
        %v746 = vunpack.c.l.b16 %v371
        %v747 = vunpack.c.h.b16 %v371
        %v748 = vunpack.c.l.b16 %v372
        %v749 = vunpack.c.h.b16 %v372
        %v750 = vunpack.c.l.b16 %v373
        %v751 = vunpack.c.h.b16 %v373
        %v752 = vunpack.c.l.b16 %v374
        %v753 = vunpack.c.h.b16 %v374
        %v754 = vunpack.c.l.b16 %v375
        %v755 = vunpack.c.h.b16 %v375
        %v756 = vunpack.c.l.b16 %v376
        %v757 = vunpack.c.h.b16 %v376
        %v758 = vunpack.c.l.b16 %v377
        %v759 = vunpack.c.h.b16 %v377
        %v760 = vunpack.c.l.b16 %v378
        %v761 = vunpack.c.h.b16 %v378
        %v762 = vunpack.c.l.b16 %v379
        %v763 = vunpack.c.h.b16 %v379
        %v764 = vunpack.c.l.b16 %v380
        %v765 = vunpack.c.h.b16 %v380
        %v766 = vunpack.c.l.b16 %v381
        %v767 = vunpack.c.h.b16 %v381
        %v768 = vunpack.c.l.b16 %v382
        %v769 = vunpack.c.h.b16 %v382
        %v770 = vunpack.c.l.b16 %v383
        %v771 = vunpack.c.h.b16 %v383
        %v772 = vunpack.c.l.b16 %v384
        %v773 = vunpack.c.h.b16 %v384
        %v774 = vunpack.c.l.b16 %v385
        %v775 = vunpack.c.h.b16 %v385
        %v776 = vunpack.c.l.b16 %v386
        %v777 = vunpack.c.h.b16 %v386
        %v778 = vunpack.c.l.b16 %v387
        %v779 = vunpack.c.h.b16 %v387
        %v780 = vunpack.c.l.b16 %v388
        %v781 = vunpack.c.h.b16 %v388
        %v782 = vunpack.c.l.b16 %v389
        %v783 = vunpack.c.h.b16 %v389
        %v784 = vunpack.c.l.b16 %v390
        %v785 = vunpack.c.h.b16 %v390
        %v786 = vunpack.c.l.b16 %v391
        %v787 = vunpack.c.h.b16 %v391
        %v788 = vunpack.c.l.b16 %v392
        %v789 = vunpack.c.h.b16 %v392
        %v790 = vunpack.c.l.b16 %v393
        %v791 = vunpack.c.h.b16 %v393
        %v792 = vunpack.c.l.b16 %v394
        %v793 = vunpack.c.h.b16 %v394
        %v794 = vunpack.c.l.b16 %v395
        %v795 = vunpack.c.h.b16 %v395
        %v796 = vunpack.c.l.b16 %v396
        %v797 = vunpack.c.h.b16 %v396
        %v798 = vunpack.c.l.b16 %v397
        %v799 = vunpack.c.h.b16 %v397
        %v800 = vunpack.c.l.b16 %v398
        %v801 = vunpack.c.h.b16 %v398
        %v802 = vunpack.c.l.b16 %v399
        %v803 = vunpack.c.h.b16 %v399
        %v804 = vunpack.c.l.b16 %v400
        %v805 = vunpack.c.h.b16 %v400
        %v806 = vunpack.c.l.b16 %v401
        %v807 = vunpack.c.h.b16 %v401
        %v808 = vunpack.c.l.b16 %v402
        %v809 = vunpack.c.h.b16 %v402
        %v810 = vunpack.c.l.b16 %v403
        %v811 = vunpack.c.h.b16 %v403
        %v812 = vunpack.c.l.b16 %v404
        %v813 = vunpack.c.h.b16 %v404
        %v814 = vunpack.c.l.b16 %v405
        %v815 = vunpack.c.h.b16 %v405
        %v816 = vunpack.c.l.b16 %v406
        %v817 = vunpack.c.h.b16 %v406
        %v818 = vunpack.c.l.b16 %v407
        %v819 = vunpack.c.h.b16 %v407
        %v820 = vunpack.c.l.b16 %v408
        %v821 = vunpack.c.h.b16 %v408
        %v822 = vunpack.c.l.b16 %v409
        %v823 = vunpack.c.h.b16 %v409
        %v824 = vunpack.c.l.b16 %v410
        %v825 = vunpack.c.h.b16 %v410
        %v826 = vunpack.c.l.b16 %v411
        %v827 = vunpack.c.h.b16 %v411
        %v828 = vpack.c.b16 %v574, %v572
        %v829 = vpack.c.b16 %v575, %v573
        %v830 = vpack.c.b16 %v578, %v576
        %v831 = vpack.c.b16 %v579, %v577
        %v832 = vpack.c.b16 %v582, %v580
        %v833 = vpack.c.b16 %v583, %v581
        %v834 = vpack.c.b16 %v586, %v584
        %v835 = vpack.c.b16 %v587, %v585
        %v836 = vpack.c.b16 %v590, %v588
        %v837 = vpack.c.b16 %v591, %v589
        %v838 = vpack.c.b16 %v594, %v592
        %v839 = vpack.c.b16 %v595, %v593
        %v840 = vpack.c.b16 %v598, %v596
        %v841 = vpack.c.b16 %v599, %v597
        %v842 = vpack.c.b16 %v602, %v600
        %v843 = vpack.c.b16 %v603, %v601
        %v844 = vpack.c.b16 %v606, %v604
        %v845 = vpack.c.b16 %v607, %v605
        %v846 = vpack.c.b16 %v610, %v608
        %v847 = vpack.c.b16 %v611, %v609
        %v848 = vpack.c.b16 %v614, %v612
        %v849 = vpack.c.b16 %v615, %v613
        %v850 = vpack.c.b16 %v618, %v616
        %v851 = vpack.c.b16 %v619, %v617
        %v852 = vpack.c.b16 %v622, %v620
        %v853 = vpack.c.b16 %v623, %v621
        %v854 = vpack.c.b16 %v626, %v624
        %v855 = vpack.c.b16 %v627, %v625
        %v856 = vpack.c.b16 %v630, %v628
        %v857 = vpack.c.b16 %v631, %v629
        %v858 = vpack.c.b16 %v634, %v632
        %v859 = vpack.c.b16 %v635, %v633
        %v860 = vpack.c.b16 %v638, %v636
        %v861 = vpack.c.b16 %v639, %v637
        %v862 = vpack.c.b16 %v642, %v640
        %v863 = vpack.c.b16 %v643, %v641
        %v864 = vpack.c.b16 %v646, %v644
        %v865 = vpack.c.b16 %v647, %v645
        %v866 = vpack.c.b16 %v650, %v648
        %v867 = vpack.c.b16 %v651, %v649
        %v868 = vpack.c.b16 %v654, %v652
        %v869 = vpack.c.b16 %v655, %v653
        %v870 = vpack.c.b16 %v658, %v656
        %v871 = vpack.c.b16 %v659, %v657
        %v872 = vpack.c.b16 %v662, %v660
        %v873 = vpack.c.b16 %v663, %v661
        %v874 = vpack.c.b16 %v666, %v664
        %v875 = vpack.c.b16 %v667, %v665
        %v876 = vpack.c.b16 %v670, %v668
        %v877 = vpack.c.b16 %v671, %v669
        %v878 = vpack.c.b16 %v674, %v672
        %v879 = vpack.c.b16 %v675, %v673
        %v880 = vpack.c.b16 %v678, %v676
        %v881 = vpack.c.b16 %v679, %v677
        %v882 = vpack.c.b16 %v682, %v680
        %v883 = vpack.c.b16 %v683, %v681
        %v884 = vpack.c.b16 %v686, %v684
        %v885 = vpack.c.b16 %v687, %v685
        %v886 = vpack.c.b16 %v690, %v688
        %v887 = vpack.c.b16 %v691, %v689
        %v888 = vpack.c.b16 %v694, %v692
        %v889 = vpack.c.b16 %v695, %v693
        %v890 = vpack.c.b16 %v698, %v696
        %v891 = vpack.c.b16 %v699, %v697
        %v892 = vpack.c.b16 %v702, %v700
        %v893 = vpack.c.b16 %v703, %v701
        %v894 = vpack.c.b16 %v706, %v704
        %v895 = vpack.c.b16 %v707, %v705
        %v896 = vpack.c.b16 %v710, %v708
        %v897 = vpack.c.b16 %v711, %v709
        %v898 = vpack.c.b16 %v714, %v712
        %v899 = vpack.c.b16 %v715, %v713
        %v900 = vpack.c.b16 %v718, %v716
        %v901 = vpack.c.b16 %v719, %v717
        %v902 = vpack.c.b16 %v722, %v720
        %v903 = vpack.c.b16 %v723, %v721
        %v904 = vpack.c.b16 %v726, %v724
        %v905 = vpack.c.b16 %v727, %v725
        %v906 = vpack.c.b16 %v730, %v728
        %v907 = vpack.c.b16 %v731, %v729
        %v908 = vpack.c.b16 %v734, %v732
        %v909 = vpack.c.b16 %v735, %v733
        %v910 = vpack.c.b16 %v738, %v736
        %v911 = vpack.c.b16 %v739, %v737
        %v912 = vpack.c.b16 %v742, %v740
        %v913 = vpack.c.b16 %v743, %v741
        %v914 = vpack.c.b16 %v746, %v744
        %v915 = vpack.c.b16 %v747, %v745
        %v916 = vpack.c.b16 %v750, %v748
        %v917 = vpack.c.b16 %v751, %v749
        %v918 = vpack.c.b16 %v754, %v752
        %v919 = vpack.c.b16 %v755, %v753
        %v920 = vpack.c.b16 %v758, %v756
        %v921 = vpack.c.b16 %v759, %v757
        %v922 = vpack.c.b16 %v762, %v760
        %v923 = vpack.c.b16 %v763, %v761
        %v924 = vpack.c.b16 %v766, %v764
        %v925 = vpack.c.b16 %v767, %v765
        %v926 = vpack.c.b16 %v770, %v768
        %v927 = vpack.c.b16 %v771, %v769
        %v928 = vpack.c.b16 %v774, %v772
        %v929 = vpack.c.b16 %v775, %v773
        %v930 = vpack.c.b16 %v778, %v776
        %v931 = vpack.c.b16 %v779, %v777
        %v932 = vpack.c.b16 %v782, %v780
        %v933 = vpack.c.b16 %v783, %v781
        %v934 = vpack.c.b16 %v786, %v784
        %v935 = vpack.c.b16 %v787, %v785
        %v936 = vpack.c.b16 %v790, %v788
        %v937 = vpack.c.b16 %v791, %v789
        %v938 = vpack.c.b16 %v794, %v792
        %v939 = vpack.c.b16 %v795, %v793
        %v940 = vpack.c.b16 %v798, %v796
        %v941 = vpack.c.b16 %v799, %v797
        %v942 = vpack.c.b16 %v802, %v800
        %v943 = vpack.c.b16 %v803, %v801
        %v944 = vpack.c.b16 %v806, %v804
        %v945 = vpack.c.b16 %v807, %v805
        %v946 = vpack.c.b16 %v810, %v808
        %v947 = vpack.c.b16 %v811, %v809
        %v948 = vpack.c.b16 %v814, %v812
        %v949 = vpack.c.b16 %v815, %v813
        %v950 = vpack.c.b16 %v818, %v816
        %v951 = vpack.c.b16 %v819, %v817
        %v952 = vpack.c.b16 %v822, %v820
        %v953 = vpack.c.b16 %v823, %v821
        %v954 = vpack.c.b16 %v826, %v824
        %v955 = vpack.c.b16 %v827, %v825
        %v1116 = vunpack.c.l.b16 %v412
        %v1117 = vunpack.c.l.b16 %v413
        %v1118 = vunpack.c.l.b16 %v414
        %v1119 = vunpack.c.l.b16 %v415
        %v1120 = vunpack.c.l.b16 %v416
        %v1121 = vunpack.c.l.b16 %v417
        %v1122 = vunpack.c.l.b16 %v418
        %v1123 = vunpack.c.l.b16 %v419
        %v1124 = vunpack.c.l.b16 %v420
        %v1125 = vunpack.c.l.b16 %v421
        %v1126 = vunpack.c.l.b16 %v422
        %v1127 = vunpack.c.l.b16 %v423
        %v1128 = vunpack.c.l.b16 %v424
        %v1129 = vunpack.c.l.b16 %v425
        %v1130 = vunpack.c.l.b16 %v426
        %v1131 = vunpack.c.l.b16 %v427
        %v1132 = vunpack.c.l.b16 %v428
        %v1133 = vunpack.c.l.b16 %v429
        %v1134 = vunpack.c.l.b16 %v430
        %v1135 = vunpack.c.l.b16 %v431
        %v1136 = vunpack.c.l.b16 %v432
        %v1137 = vunpack.c.l.b16 %v433
        %v1138 = vunpack.c.l.b16 %v434
        %v1139 = vunpack.c.l.b16 %v435
        %v1140 = vunpack.c.l.b16 %v436
        %v1141 = vunpack.c.l.b16 %v437
        %v1142 = vunpack.c.l.b16 %v438
        %v1143 = vunpack.c.l.b16 %v439
        %v1144 = vunpack.c.l.b16 %v440
        %v1145 = vunpack.c.l.b16 %v441
        %v1146 = vunpack.c.l.b16 %v442
        %v1147 = vunpack.c.l.b16 %v443
        %v1148 = vpack.c.b16 %v1117, %v1116
        %v1149 = vpack.c.b16 %v1119, %v1118
        %v1150 = vpack.c.b16 %v1121, %v1120
        %v1151 = vpack.c.b16 %v1123, %v1122
        %v1152 = vpack.c.b16 %v1125, %v1124
        %v1153 = vpack.c.b16 %v1127, %v1126
        %v1154 = vpack.c.b16 %v1129, %v1128
        %v1155 = vpack.c.b16 %v1131, %v1130
        %v1156 = vpack.c.b16 %v1133, %v1132
        %v1157 = vpack.c.b16 %v1135, %v1134
        %v1158 = vpack.c.b16 %v1137, %v1136
        %v1159 = vpack.c.b16 %v1139, %v1138
        %v1160 = vpack.c.b16 %v1141, %v1140
        %v1161 = vpack.c.b16 %v1143, %v1142
        %v1162 = vpack.c.b16 %v1145, %v1144
        %v1163 = vpack.c.b16 %v1147, %v1146
        %1180 = vmatprep.subr.bf16.mxu0 0
        %1181 = vmatpush1.bf16.msra.mxu0 %v1155
        %1182 = vmatprep.subr.bf16.mxu0 0
        %1183 = vmatpush1.bf16.msra.mxu0 %v1154
        %1184 = vmatprep.subr.bf16.mxu0 0
        %1185 = vmatpush1.bf16.msra.mxu0 %v1153
        %1186 = vmatprep.subr.bf16.mxu0 0
        %1187 = vmatpush1.bf16.msra.mxu0 %v1152
        %1188 = vmatprep.subr.bf16.mxu0 0
        %1189 = vmatpush1.bf16.msra.mxu0 %v1151
        %1190 = vmatprep.subr.bf16.mxu0 0
        %1191 = vmatpush1.bf16.msra.mxu0 %v1150
        %1192 = vmatprep.subr.bf16.mxu0 0
        %1193 = vmatpush1.bf16.msra.mxu0 %v1149
        %1194 = vmatprep.subr.bf16.mxu0 0
        %1195 = vmatpush1.bf16.msra.mxu0 %v1148
        %1196 = vmatprep.subr.bf16.mxu0 0
        %1197 = vmatpush2.bf16.msra.mxu0 %v1163
        %1198 = vmatprep.subr.bf16.mxu0 0
        %1199 = vmatpush2.bf16.msra.mxu0 %v1162
        %1200 = vmatprep.subr.bf16.mxu0 0
        %1201 = vmatpush2.bf16.msra.mxu0 %v1161
        %1202 = vmatprep.subr.bf16.mxu0 0
        %1203 = vmatpush2.bf16.msra.mxu0 %v1160
        %1204 = vmatprep.subr.bf16.mxu0 0
        %1205 = vmatpush2.bf16.msra.mxu0 %v1159
        %1206 = vmatprep.subr.bf16.mxu0 0
        %1207 = vmatpush2.bf16.msra.mxu0 %v1158
        %1208 = vmatprep.subr.bf16.mxu0 0
        %1209 = vmatpush2.bf16.msra.mxu0 %v1157
        %1210 = vmatprep.subr.bf16.mxu0 0
        %1211 = vmatpush2.bf16.msra.mxu0 %v1156
        %1212 = vmatprep.mubr.bf16.mxu0 %v829
        %1213 = vmatmul.mubr.bf16.gmra.mxu0 %v828
        %v1214 = vpop.f32.mrf.mxu0
        %v1215 = vadd.f32 0.0, %v1214
        %v1216 = vpop.f32.mrf.mxu0
        %v1217 = vpop.f32.mrf.mxu0
        %v1218 = vadd.f32 0.0, %v1217
        %v1219 = vpop.f32.mrf.mxu0
        %1220 = vmatprep.mubr.bf16.mxu0 %v831
        %1221 = vmatmul.mubr.bf16.gmra.mxu0 %v830
        %v1222 = vpop.f32.mrf.mxu0
        %v1223 = vadd.f32 0.0, %v1222
        %v1224 = vpop.f32.mrf.mxu0
        %v1225 = vpop.f32.mrf.mxu0
        %v1226 = vadd.f32 0.0, %v1225
        %v1227 = vpop.f32.mrf.mxu0
        %1228 = vmatprep.mubr.bf16.mxu0 %v833
        %1229 = vmatmul.mubr.bf16.gmra.mxu0 %v832
        %v1230 = vpop.f32.mrf.mxu0
        %v1231 = vadd.f32 0.0, %v1230
        %v1232 = vpop.f32.mrf.mxu0
        %v1233 = vpop.f32.mrf.mxu0
        %v1234 = vadd.f32 0.0, %v1233
        %v1235 = vpop.f32.mrf.mxu0
        %1236 = vmatprep.mubr.bf16.mxu0 %v835
        %1237 = vmatmul.mubr.bf16.gmra.mxu0 %v834
        %v1238 = vpop.f32.mrf.mxu0
        %v1239 = vadd.f32 0.0, %v1238
        %v1240 = vpop.f32.mrf.mxu0
        %v1241 = vpop.f32.mrf.mxu0
        %v1242 = vadd.f32 0.0, %v1241
        %v1243 = vpop.f32.mrf.mxu0
        %1244 = vmatprep.mubr.bf16.mxu0 %v837
        %1245 = vmatmul.mubr.bf16.gmra.mxu0 %v836
        %v1246 = vpop.f32.mrf.mxu0
        %v1247 = vadd.f32 0.0, %v1246
        %v1248 = vpop.f32.mrf.mxu0
        %v1249 = vpop.f32.mrf.mxu0
        %v1250 = vadd.f32 0.0, %v1249
        %v1251 = vpop.f32.mrf.mxu0
        %1252 = vmatprep.mubr.bf16.mxu0 %v839
        %1253 = vmatmul.mubr.bf16.gmra.mxu0 %v838
        %v1254 = vpop.f32.mrf.mxu0
        %v1255 = vadd.f32 0.0, %v1254
        %v1256 = vpop.f32.mrf.mxu0
        %v1257 = vpop.f32.mrf.mxu0
        %v1258 = vadd.f32 0.0, %v1257
        %v1259 = vpop.f32.mrf.mxu0
        %1260 = vmatprep.mubr.bf16.mxu0 %v841
        %1261 = vmatmul.mubr.bf16.gmra.mxu0 %v840
        %v1262 = vpop.f32.mrf.mxu0
        %v1263 = vadd.f32 0.0, %v1262
        %v1264 = vpop.f32.mrf.mxu0
        %v1265 = vpop.f32.mrf.mxu0
        %v1266 = vadd.f32 0.0, %v1265
        %v1267 = vpop.f32.mrf.mxu0
        %1268 = vmatprep.mubr.bf16.mxu0 %v843
        %1269 = vmatmul.mubr.bf16.gmra.mxu0 %v842
        %v1270 = vpop.f32.mrf.mxu0
        %v1271 = vadd.f32 0.0, %v1270
        %v1272 = vpop.f32.mrf.mxu0
        %v1273 = vpop.f32.mrf.mxu0
        %v1274 = vadd.f32 0.0, %v1273
        %v1275 = vpop.f32.mrf.mxu0
        %1276 = vmatprep.mubr.bf16.mxu0 %v845
        %1277 = vmatmul.mubr.bf16.gmra.mxu0 %v844
        %v1278 = vpop.f32.mrf.mxu0
        %v1279 = vadd.f32 0.0, %v1278
        %v1280 = vpop.f32.mrf.mxu0
        %v1281 = vpop.f32.mrf.mxu0
        %v1282 = vadd.f32 0.0, %v1281
        %v1283 = vpop.f32.mrf.mxu0
        %1284 = vmatprep.mubr.bf16.mxu0 %v847
        %1285 = vmatmul.mubr.bf16.gmra.mxu0 %v846
        %v1286 = vpop.f32.mrf.mxu0
        %v1287 = vadd.f32 0.0, %v1286
        %v1288 = vpop.f32.mrf.mxu0
        %v1289 = vpop.f32.mrf.mxu0
        %v1290 = vadd.f32 0.0, %v1289
        %v1291 = vpop.f32.mrf.mxu0
        %1292 = vmatprep.mubr.bf16.mxu0 %v849
        %1293 = vmatmul.mubr.bf16.gmra.mxu0 %v848
        %v1294 = vpop.f32.mrf.mxu0
        %v1295 = vadd.f32 0.0, %v1294
        %v1296 = vpop.f32.mrf.mxu0
        %v1297 = vpop.f32.mrf.mxu0
        %v1298 = vadd.f32 0.0, %v1297
        %v1299 = vpop.f32.mrf.mxu0
        %1300 = vmatprep.mubr.bf16.mxu0 %v851
        %1301 = vmatmul.mubr.bf16.gmra.mxu0 %v850
        %v1302 = vpop.f32.mrf.mxu0
        %v1303 = vadd.f32 0.0, %v1302
        %v1304 = vpop.f32.mrf.mxu0
        %v1305 = vpop.f32.mrf.mxu0
        %v1306 = vadd.f32 0.0, %v1305
        %v1307 = vpop.f32.mrf.mxu0
        %1308 = vmatprep.mubr.bf16.mxu0 %v853
        %1309 = vmatmul.mubr.bf16.gmra.mxu0 %v852
        %v1310 = vpop.f32.mrf.mxu0
        %v1311 = vadd.f32 0.0, %v1310
        %v1312 = vpop.f32.mrf.mxu0
        %v1313 = vpop.f32.mrf.mxu0
        %v1314 = vadd.f32 0.0, %v1313
        %v1315 = vpop.f32.mrf.mxu0
        %1316 = vmatprep.mubr.bf16.mxu0 %v855
        %1317 = vmatmul.mubr.bf16.gmra.mxu0 %v854
        %v1318 = vpop.f32.mrf.mxu0
        %v1319 = vadd.f32 0.0, %v1318
        %v1320 = vpop.f32.mrf.mxu0
        %v1321 = vpop.f32.mrf.mxu0
        %v1322 = vadd.f32 0.0, %v1321
        %v1323 = vpop.f32.mrf.mxu0
        %1324 = vmatprep.mubr.bf16.mxu0 %v857
        %1325 = vmatmul.mubr.bf16.gmra.mxu0 %v856
        %v1326 = vpop.f32.mrf.mxu0
        %v1327 = vadd.f32 0.0, %v1326
        %v1328 = vpop.f32.mrf.mxu0
        %v1329 = vpop.f32.mrf.mxu0
        %v1330 = vadd.f32 0.0, %v1329
        %v1331 = vpop.f32.mrf.mxu0
        %1332 = vmatprep.mubr.bf16.mxu0 %v859
        %1333 = vmatmul.mubr.bf16.gmra.mxu0 %v858
        %v1334 = vpop.f32.mrf.mxu0
        %v1335 = vadd.f32 0.0, %v1334
        %v1336 = vpop.f32.mrf.mxu0
        %v1337 = vpop.f32.mrf.mxu0
        %v1338 = vadd.f32 0.0, %v1337
        %v1339 = vpop.f32.mrf.mxu0
        %1340 = vmatprep.mubr.bf16.mxu0 %v861
        %1341 = vmatmul.mubr.bf16.gmra.mxu0 %v860
        %v1342 = vpop.f32.mrf.mxu0
        %v1343 = vadd.f32 0.0, %v1342
        %v1344 = vpop.f32.mrf.mxu0
        %v1345 = vpop.f32.mrf.mxu0
        %v1346 = vadd.f32 0.0, %v1345
        %v1347 = vpop.f32.mrf.mxu0
        %1348 = vmatprep.mubr.bf16.mxu0 %v863
        %1349 = vmatmul.mubr.bf16.gmra.mxu0 %v862
        %v1350 = vpop.f32.mrf.mxu0
        %v1351 = vadd.f32 0.0, %v1350
        %v1352 = vpop.f32.mrf.mxu0
        %v1353 = vpop.f32.mrf.mxu0
        %v1354 = vadd.f32 0.0, %v1353
        %v1355 = vpop.f32.mrf.mxu0
        %1356 = vmatprep.mubr.bf16.mxu0 %v865
        %1357 = vmatmul.mubr.bf16.gmra.mxu0 %v864
        %v1358 = vpop.f32.mrf.mxu0
        %v1359 = vadd.f32 0.0, %v1358
        %v1360 = vpop.f32.mrf.mxu0
        %v1361 = vpop.f32.mrf.mxu0
        %v1362 = vadd.f32 0.0, %v1361
        %v1363 = vpop.f32.mrf.mxu0
        %1364 = vmatprep.mubr.bf16.mxu0 %v867
        %1365 = vmatmul.mubr.bf16.gmra.mxu0 %v866
        %v1366 = vpop.f32.mrf.mxu0
        %v1367 = vadd.f32 0.0, %v1366
        %v1368 = vpop.f32.mrf.mxu0
        %v1369 = vpop.f32.mrf.mxu0
        %v1370 = vadd.f32 0.0, %v1369
        %v1371 = vpop.f32.mrf.mxu0
        %1372 = vmatprep.mubr.bf16.mxu0 %v869
        %1373 = vmatmul.mubr.bf16.gmra.mxu0 %v868
        %v1374 = vpop.f32.mrf.mxu0
        %v1375 = vadd.f32 0.0, %v1374
        %v1376 = vpop.f32.mrf.mxu0
        %v1377 = vpop.f32.mrf.mxu0
        %v1378 = vadd.f32 0.0, %v1377
        %v1379 = vpop.f32.mrf.mxu0
        %1380 = vmatprep.mubr.bf16.mxu0 %v871
        %1381 = vmatmul.mubr.bf16.gmra.mxu0 %v870
        %v1382 = vpop.f32.mrf.mxu0
        %v1383 = vadd.f32 0.0, %v1382
        %v1384 = vpop.f32.mrf.mxu0
        %v1385 = vpop.f32.mrf.mxu0
        %v1386 = vadd.f32 0.0, %v1385
        %v1387 = vpop.f32.mrf.mxu0
        %1388 = vmatprep.mubr.bf16.mxu0 %v873
        %1389 = vmatmul.mubr.bf16.gmra.mxu0 %v872
        %v1390 = vpop.f32.mrf.mxu0
        %v1391 = vadd.f32 0.0, %v1390
        %v1392 = vpop.f32.mrf.mxu0
        %v1393 = vpop.f32.mrf.mxu0
        %v1394 = vadd.f32 0.0, %v1393
        %v1395 = vpop.f32.mrf.mxu0
        %1396 = vmatprep.mubr.bf16.mxu0 %v875
        %1397 = vmatmul.mubr.bf16.gmra.mxu0 %v874
        %v1398 = vpop.f32.mrf.mxu0
        %v1399 = vadd.f32 0.0, %v1398
        %v1400 = vpop.f32.mrf.mxu0
        %v1401 = vpop.f32.mrf.mxu0
        %v1402 = vadd.f32 0.0, %v1401
        %v1403 = vpop.f32.mrf.mxu0
        %1404 = vmatprep.mubr.bf16.mxu0 %v877
        %1405 = vmatmul.mubr.bf16.gmra.mxu0 %v876
        %v1406 = vpop.f32.mrf.mxu0
        %v1407 = vadd.f32 0.0, %v1406
        %v1408 = vpop.f32.mrf.mxu0
        %v1409 = vpop.f32.mrf.mxu0
        %v1410 = vadd.f32 0.0, %v1409
        %v1411 = vpop.f32.mrf.mxu0
        %1412 = vmatprep.mubr.bf16.mxu0 %v879
        %1413 = vmatmul.mubr.bf16.gmra.mxu0 %v878
        %v1414 = vpop.f32.mrf.mxu0
        %v1415 = vadd.f32 0.0, %v1414
        %v1416 = vpop.f32.mrf.mxu0
        %v1417 = vpop.f32.mrf.mxu0
        %v1418 = vadd.f32 0.0, %v1417
        %v1419 = vpop.f32.mrf.mxu0
        %1420 = vmatprep.mubr.bf16.mxu0 %v881
        %1421 = vmatmul.mubr.bf16.gmra.mxu0 %v880
        %v1422 = vpop.f32.mrf.mxu0
        %v1423 = vadd.f32 0.0, %v1422
        %v1424 = vpop.f32.mrf.mxu0
        %v1425 = vpop.f32.mrf.mxu0
        %v1426 = vadd.f32 0.0, %v1425
        %v1427 = vpop.f32.mrf.mxu0
        %1428 = vmatprep.mubr.bf16.mxu0 %v883
        %1429 = vmatmul.mubr.bf16.gmra.mxu0 %v882
        %v1430 = vpop.f32.mrf.mxu0
        %v1431 = vadd.f32 0.0, %v1430
        %v1432 = vpop.f32.mrf.mxu0
        %v1433 = vpop.f32.mrf.mxu0
        %v1434 = vadd.f32 0.0, %v1433
        %v1435 = vpop.f32.mrf.mxu0
        %1436 = vmatprep.mubr.bf16.mxu0 %v885
        %1437 = vmatmul.mubr.bf16.gmra.mxu0 %v884
        %v1438 = vpop.f32.mrf.mxu0
        %v1439 = vadd.f32 0.0, %v1438
        %v1440 = vpop.f32.mrf.mxu0
        %v1441 = vpop.f32.mrf.mxu0
        %v1442 = vadd.f32 0.0, %v1441
        %v1443 = vpop.f32.mrf.mxu0
        %1444 = vmatprep.mubr.bf16.mxu0 %v887
        %1445 = vmatmul.mubr.bf16.gmra.mxu0 %v886
        %v1446 = vpop.f32.mrf.mxu0
        %v1447 = vadd.f32 0.0, %v1446
        %v1448 = vpop.f32.mrf.mxu0
        %v1449 = vpop.f32.mrf.mxu0
        %v1450 = vadd.f32 0.0, %v1449
        %v1451 = vpop.f32.mrf.mxu0
        %1452 = vmatprep.mubr.bf16.mxu0 %v889
        %1453 = vmatmul.mubr.bf16.gmra.mxu0 %v888
        %v1454 = vpop.f32.mrf.mxu0
        %v1455 = vadd.f32 0.0, %v1454
        %v1456 = vpop.f32.mrf.mxu0
        %v1457 = vpop.f32.mrf.mxu0
        %v1458 = vadd.f32 0.0, %v1457
        %v1459 = vpop.f32.mrf.mxu0
        %1460 = vmatprep.mubr.bf16.mxu0 %v891
        %1461 = vmatmul.mubr.bf16.gmra.mxu0 %v890
        %v1462 = vpop.f32.mrf.mxu0
        %v1463 = vadd.f32 0.0, %v1462
        %v1464 = vpop.f32.mrf.mxu0
        %v1465 = vpop.f32.mrf.mxu0
        %v1466 = vadd.f32 0.0, %v1465
        %v1467 = vpop.f32.mrf.mxu0
        %1468 = vmatprep.mubr.bf16.mxu0 %v893
        %1469 = vmatmul.mubr.bf16.gmra.mxu0 %v892
        %v1470 = vpop.f32.mrf.mxu0
        %v1471 = vadd.f32 0.0, %v1470
        %v1472 = vpop.f32.mrf.mxu0
        %v1473 = vpop.f32.mrf.mxu0
        %v1474 = vadd.f32 0.0, %v1473
        %v1475 = vpop.f32.mrf.mxu0
        %1476 = vmatprep.mubr.bf16.mxu0 %v895
        %1477 = vmatmul.mubr.bf16.gmra.mxu0 %v894
        %v1478 = vpop.f32.mrf.mxu0
        %v1479 = vadd.f32 0.0, %v1478
        %v1480 = vpop.f32.mrf.mxu0
        %v1481 = vpop.f32.mrf.mxu0
        %v1482 = vadd.f32 0.0, %v1481
        %v1483 = vpop.f32.mrf.mxu0
        %1484 = vmatprep.mubr.bf16.mxu0 %v897
        %1485 = vmatmul.mubr.bf16.gmra.mxu0 %v896
        %v1486 = vpop.f32.mrf.mxu0
        %v1487 = vadd.f32 0.0, %v1486
        %v1488 = vpop.f32.mrf.mxu0
        %v1489 = vpop.f32.mrf.mxu0
        %v1490 = vadd.f32 0.0, %v1489
        %v1491 = vpop.f32.mrf.mxu0
        %1492 = vmatprep.mubr.bf16.mxu0 %v899
        %1493 = vmatmul.mubr.bf16.gmra.mxu0 %v898
        %v1494 = vpop.f32.mrf.mxu0
        %v1495 = vadd.f32 0.0, %v1494
        %v1496 = vpop.f32.mrf.mxu0
        %v1497 = vpop.f32.mrf.mxu0
        %v1498 = vadd.f32 0.0, %v1497
        %v1499 = vpop.f32.mrf.mxu0
        %1500 = vmatprep.mubr.bf16.mxu0 %v901
        %1501 = vmatmul.mubr.bf16.gmra.mxu0 %v900
        %v1502 = vpop.f32.mrf.mxu0
        %v1503 = vadd.f32 0.0, %v1502
        %v1504 = vpop.f32.mrf.mxu0
        %v1505 = vpop.f32.mrf.mxu0
        %v1506 = vadd.f32 0.0, %v1505
        %v1507 = vpop.f32.mrf.mxu0
        %1508 = vmatprep.mubr.bf16.mxu0 %v903
        %1509 = vmatmul.mubr.bf16.gmra.mxu0 %v902
        %v1510 = vpop.f32.mrf.mxu0
        %v1511 = vadd.f32 0.0, %v1510
        %v1512 = vpop.f32.mrf.mxu0
        %v1513 = vpop.f32.mrf.mxu0
        %v1514 = vadd.f32 0.0, %v1513
        %v1515 = vpop.f32.mrf.mxu0
        %1516 = vmatprep.mubr.bf16.mxu0 %v905
        %1517 = vmatmul.mubr.bf16.gmra.mxu0 %v904
        %v1518 = vpop.f32.mrf.mxu0
        %v1519 = vadd.f32 0.0, %v1518
        %v1520 = vpop.f32.mrf.mxu0
        %v1521 = vpop.f32.mrf.mxu0
        %v1522 = vadd.f32 0.0, %v1521
        %v1523 = vpop.f32.mrf.mxu0
        %1524 = vmatprep.mubr.bf16.mxu0 %v907
        %1525 = vmatmul.mubr.bf16.gmra.mxu0 %v906
        %v1526 = vpop.f32.mrf.mxu0
        %v1527 = vadd.f32 0.0, %v1526
        %v1528 = vpop.f32.mrf.mxu0
        %v1529 = vpop.f32.mrf.mxu0
        %v1530 = vadd.f32 0.0, %v1529
        %v1531 = vpop.f32.mrf.mxu0
        %1532 = vmatprep.mubr.bf16.mxu0 %v909
        %1533 = vmatmul.mubr.bf16.gmra.mxu0 %v908
        %v1534 = vpop.f32.mrf.mxu0
        %v1535 = vadd.f32 0.0, %v1534
        %v1536 = vpop.f32.mrf.mxu0
        %v1537 = vpop.f32.mrf.mxu0
        %v1538 = vadd.f32 0.0, %v1537
        %v1539 = vpop.f32.mrf.mxu0
        %1540 = vmatprep.mubr.bf16.mxu0 %v911
        %1541 = vmatmul.mubr.bf16.gmra.mxu0 %v910
        %v1542 = vpop.f32.mrf.mxu0
        %v1543 = vadd.f32 0.0, %v1542
        %v1544 = vpop.f32.mrf.mxu0
        %v1545 = vpop.f32.mrf.mxu0
        %v1546 = vadd.f32 0.0, %v1545
        %v1547 = vpop.f32.mrf.mxu0
        %1548 = vmatprep.mubr.bf16.mxu0 %v913
        %1549 = vmatmul.mubr.bf16.gmra.mxu0 %v912
        %v1550 = vpop.f32.mrf.mxu0
        %v1551 = vadd.f32 0.0, %v1550
        %v1552 = vpop.f32.mrf.mxu0
        %v1553 = vpop.f32.mrf.mxu0
        %v1554 = vadd.f32 0.0, %v1553
        %v1555 = vpop.f32.mrf.mxu0
        %1556 = vmatprep.mubr.bf16.mxu0 %v915
        %1557 = vmatmul.mubr.bf16.gmra.mxu0 %v914
        %v1558 = vpop.f32.mrf.mxu0
        %v1559 = vadd.f32 0.0, %v1558
        %v1560 = vpop.f32.mrf.mxu0
        %v1561 = vpop.f32.mrf.mxu0
        %v1562 = vadd.f32 0.0, %v1561
        %v1563 = vpop.f32.mrf.mxu0
        %1564 = vmatprep.mubr.bf16.mxu0 %v917
        %1565 = vmatmul.mubr.bf16.gmra.mxu0 %v916
        %v1566 = vpop.f32.mrf.mxu0
        %v1567 = vadd.f32 0.0, %v1566
        %v1568 = vpop.f32.mrf.mxu0
        %v1569 = vpop.f32.mrf.mxu0
        %v1570 = vadd.f32 0.0, %v1569
        %v1571 = vpop.f32.mrf.mxu0
        %1572 = vmatprep.mubr.bf16.mxu0 %v919
        %1573 = vmatmul.mubr.bf16.gmra.mxu0 %v918
        %v1574 = vpop.f32.mrf.mxu0
        %v1575 = vadd.f32 0.0, %v1574
        %v1576 = vpop.f32.mrf.mxu0
        %v1577 = vpop.f32.mrf.mxu0
        %v1578 = vadd.f32 0.0, %v1577
        %v1579 = vpop.f32.mrf.mxu0
        %1580 = vmatprep.mubr.bf16.mxu0 %v921
        %1581 = vmatmul.mubr.bf16.gmra.mxu0 %v920
        %v1582 = vpop.f32.mrf.mxu0
        %v1583 = vadd.f32 0.0, %v1582
        %v1584 = vpop.f32.mrf.mxu0
        %v1585 = vpop.f32.mrf.mxu0
        %v1586 = vadd.f32 0.0, %v1585
        %v1587 = vpop.f32.mrf.mxu0
        %1588 = vmatprep.mubr.bf16.mxu0 %v923
        %1589 = vmatmul.mubr.bf16.gmra.mxu0 %v922
        %v1590 = vpop.f32.mrf.mxu0
        %v1591 = vadd.f32 0.0, %v1590
        %v1592 = vpop.f32.mrf.mxu0
        %v1593 = vpop.f32.mrf.mxu0
        %v1594 = vadd.f32 0.0, %v1593
        %v1595 = vpop.f32.mrf.mxu0
        %1596 = vmatprep.mubr.bf16.mxu0 %v925
        %1597 = vmatmul.mubr.bf16.gmra.mxu0 %v924
        %v1598 = vpop.f32.mrf.mxu0
        %v1599 = vadd.f32 0.0, %v1598
        %v1600 = vpop.f32.mrf.mxu0
        %v1601 = vpop.f32.mrf.mxu0
        %v1602 = vadd.f32 0.0, %v1601
        %v1603 = vpop.f32.mrf.mxu0
        %1604 = vmatprep.mubr.bf16.mxu0 %v927
        %1605 = vmatmul.mubr.bf16.gmra.mxu0 %v926
        %v1606 = vpop.f32.mrf.mxu0
        %v1607 = vadd.f32 0.0, %v1606
        %v1608 = vpop.f32.mrf.mxu0
        %v1609 = vpop.f32.mrf.mxu0
        %v1610 = vadd.f32 0.0, %v1609
        %v1611 = vpop.f32.mrf.mxu0
        %1612 = vmatprep.mubr.bf16.mxu0 %v929
        %1613 = vmatmul.mubr.bf16.gmra.mxu0 %v928
        %v1614 = vpop.f32.mrf.mxu0
        %v1615 = vadd.f32 0.0, %v1614
        %v1616 = vpop.f32.mrf.mxu0
        %v1617 = vpop.f32.mrf.mxu0
        %v1618 = vadd.f32 0.0, %v1617
        %v1619 = vpop.f32.mrf.mxu0
        %1620 = vmatprep.mubr.bf16.mxu0 %v931
        %1621 = vmatmul.mubr.bf16.gmra.mxu0 %v930
        %v1622 = vpop.f32.mrf.mxu0
        %v1623 = vadd.f32 0.0, %v1622
        %v1624 = vpop.f32.mrf.mxu0
        %v1625 = vpop.f32.mrf.mxu0
        %v1626 = vadd.f32 0.0, %v1625
        %v1627 = vpop.f32.mrf.mxu0
        %1628 = vmatprep.mubr.bf16.mxu0 %v933
        %1629 = vmatmul.mubr.bf16.gmra.mxu0 %v932
        %v1630 = vpop.f32.mrf.mxu0
        %v1631 = vadd.f32 0.0, %v1630
        %v1632 = vpop.f32.mrf.mxu0
        %v1633 = vpop.f32.mrf.mxu0
        %v1634 = vadd.f32 0.0, %v1633
        %v1635 = vpop.f32.mrf.mxu0
        %1636 = vmatprep.mubr.bf16.mxu0 %v935
        %1637 = vmatmul.mubr.bf16.gmra.mxu0 %v934
        %v1638 = vpop.f32.mrf.mxu0
        %v1639 = vadd.f32 0.0, %v1638
        %v1640 = vpop.f32.mrf.mxu0
        %v1641 = vpop.f32.mrf.mxu0
        %v1642 = vadd.f32 0.0, %v1641
        %v1643 = vpop.f32.mrf.mxu0
        %1644 = vmatprep.mubr.bf16.mxu0 %v937
        %1645 = vmatmul.mubr.bf16.gmra.mxu0 %v936
        %v1646 = vpop.f32.mrf.mxu0
        %v1647 = vadd.f32 0.0, %v1646
        %v1648 = vpop.f32.mrf.mxu0
        %v1649 = vpop.f32.mrf.mxu0
        %v1650 = vadd.f32 0.0, %v1649
        %v1651 = vpop.f32.mrf.mxu0
        %1652 = vmatprep.mubr.bf16.mxu0 %v939
        %1653 = vmatmul.mubr.bf16.gmra.mxu0 %v938
        %v1654 = vpop.f32.mrf.mxu0
        %v1655 = vadd.f32 0.0, %v1654
        %v1656 = vpop.f32.mrf.mxu0
        %v1657 = vpop.f32.mrf.mxu0
        %v1658 = vadd.f32 0.0, %v1657
        %v1659 = vpop.f32.mrf.mxu0
        %1660 = vmatprep.mubr.bf16.mxu0 %v941
        %1661 = vmatmul.mubr.bf16.gmra.mxu0 %v940
        %v1662 = vpop.f32.mrf.mxu0
        %v1663 = vadd.f32 0.0, %v1662
        %v1664 = vpop.f32.mrf.mxu0
        %v1665 = vpop.f32.mrf.mxu0
        %v1666 = vadd.f32 0.0, %v1665
        %v1667 = vpop.f32.mrf.mxu0
        %1668 = vmatprep.mubr.bf16.mxu0 %v943
        %1669 = vmatmul.mubr.bf16.gmra.mxu0 %v942
        %v1670 = vpop.f32.mrf.mxu0
        %v1671 = vadd.f32 0.0, %v1670
        %v1672 = vpop.f32.mrf.mxu0
        %v1673 = vpop.f32.mrf.mxu0
        %v1674 = vadd.f32 0.0, %v1673
        %v1675 = vpop.f32.mrf.mxu0
        %1676 = vmatprep.mubr.bf16.mxu0 %v945
        %1677 = vmatmul.mubr.bf16.gmra.mxu0 %v944
        %v1678 = vpop.f32.mrf.mxu0
        %v1679 = vadd.f32 0.0, %v1678
        %v1680 = vpop.f32.mrf.mxu0
        %v1681 = vpop.f32.mrf.mxu0
        %v1682 = vadd.f32 0.0, %v1681
        %v1683 = vpop.f32.mrf.mxu0
        %1684 = vmatprep.mubr.bf16.mxu0 %v947
        %1685 = vmatmul.mubr.bf16.gmra.mxu0 %v946
        %v1686 = vpop.f32.mrf.mxu0
        %v1687 = vadd.f32 0.0, %v1686
        %v1688 = vpop.f32.mrf.mxu0
        %v1689 = vpop.f32.mrf.mxu0
        %v1690 = vadd.f32 0.0, %v1689
        %v1691 = vpop.f32.mrf.mxu0
        %1692 = vmatprep.mubr.bf16.mxu0 %v949
        %1693 = vmatmul.mubr.bf16.gmra.mxu0 %v948
        %v1694 = vpop.f32.mrf.mxu0
        %v1695 = vadd.f32 0.0, %v1694
        %v1696 = vpop.f32.mrf.mxu0
        %v1697 = vpop.f32.mrf.mxu0
        %v1698 = vadd.f32 0.0, %v1697
        %v1699 = vpop.f32.mrf.mxu0
        %1700 = vmatprep.mubr.bf16.mxu0 %v951
        %1701 = vmatmul.mubr.bf16.gmra.mxu0 %v950
        %v1702 = vpop.f32.mrf.mxu0
        %v1703 = vadd.f32 0.0, %v1702
        %v1704 = vpop.f32.mrf.mxu0
        %v1705 = vpop.f32.mrf.mxu0
        %v1706 = vadd.f32 0.0, %v1705
        %v1707 = vpop.f32.mrf.mxu0
        %1708 = vmatprep.mubr.bf16.mxu0 %v953
        %1709 = vmatmul.mubr.bf16.gmra.mxu0 %v952
        %v1710 = vpop.f32.mrf.mxu0
        %v1711 = vadd.f32 0.0, %v1710
        %v1712 = vpop.f32.mrf.mxu0
        %v1713 = vpop.f32.mrf.mxu0
        %v1714 = vadd.f32 0.0, %v1713
        %v1715 = vpop.f32.mrf.mxu0
        %1716 = vmatprep.mubr.bf16.mxu0 %v955
        %1717 = vmatmul.mubr.bf16.gmra.mxu0 %v954
        %v1718 = vpop.f32.mrf.mxu0
        %v1719 = vadd.f32 0.0, %v1718
        %v1720 = vpop.f32.mrf.mxu0
        %v1721 = vpop.f32.mrf.mxu0
        %v1722 = vadd.f32 0.0, %v1721
        %v1723 = vpop.f32.mrf.mxu0
        %1724 = vdwg.mxu0
        %v1725 = vld [vmem:[%s278] sm:$0x1]
        %v1727 = vlaneseq
        %v1728 = vshrl.u32 %v1727, 7
        %v1729 = vsub.s32 0, %v1728
        %v1730 = vrot.slane %v1725, %v1729
        %v1732 = vmul.f32 %v1215, %v1730
        %v1733 = vmul.f32 %v1218, %v1730
        %v1734 = vmul.f32 %v1223, %v1730
        %v1735 = vmul.f32 %v1226, %v1730
        %v1736 = vmul.f32 %v1231, %v1730
        %v1737 = vmul.f32 %v1234, %v1730
        %v1738 = vmul.f32 %v1239, %v1730
        %v1739 = vmul.f32 %v1242, %v1730
        %v1740 = vmul.f32 %v1247, %v1730
        %v1741 = vmul.f32 %v1250, %v1730
        %v1742 = vmul.f32 %v1255, %v1730
        %v1743 = vmul.f32 %v1258, %v1730
        %v1744 = vmul.f32 %v1263, %v1730
        %v1745 = vmul.f32 %v1266, %v1730
        %v1746 = vmul.f32 %v1271, %v1730
        %v1747 = vmul.f32 %v1274, %v1730
        %v1748 = vmul.f32 %v1279, %v1730
        %v1749 = vmul.f32 %v1282, %v1730
        %v1750 = vmul.f32 %v1287, %v1730
        %v1751 = vmul.f32 %v1290, %v1730
        %v1752 = vmul.f32 %v1295, %v1730
        %v1753 = vmul.f32 %v1298, %v1730
        %v1754 = vmul.f32 %v1303, %v1730
        %v1755 = vmul.f32 %v1306, %v1730
        %v1756 = vmul.f32 %v1311, %v1730
        %v1757 = vmul.f32 %v1314, %v1730
        %v1758 = vmul.f32 %v1319, %v1730
        %v1759 = vmul.f32 %v1322, %v1730
        %v1760 = vmul.f32 %v1327, %v1730
        %v1761 = vmul.f32 %v1330, %v1730
        %v1762 = vmul.f32 %v1335, %v1730
        %v1763 = vmul.f32 %v1338, %v1730
        %v1764 = vmul.f32 %v1343, %v1730
        %v1765 = vmul.f32 %v1346, %v1730
        %v1766 = vmul.f32 %v1351, %v1730
        %v1767 = vmul.f32 %v1354, %v1730
        %v1768 = vmul.f32 %v1359, %v1730
        %v1769 = vmul.f32 %v1362, %v1730
        %v1770 = vmul.f32 %v1367, %v1730
        %v1771 = vmul.f32 %v1370, %v1730
        %v1772 = vmul.f32 %v1375, %v1730
        %v1773 = vmul.f32 %v1378, %v1730
        %v1774 = vmul.f32 %v1383, %v1730
        %v1775 = vmul.f32 %v1386, %v1730
        %v1776 = vmul.f32 %v1391, %v1730
        %v1777 = vmul.f32 %v1394, %v1730
        %v1778 = vmul.f32 %v1399, %v1730
        %v1779 = vmul.f32 %v1402, %v1730
        %v1780 = vmul.f32 %v1407, %v1730
        %v1781 = vmul.f32 %v1410, %v1730
        %v1782 = vmul.f32 %v1415, %v1730
        %v1783 = vmul.f32 %v1418, %v1730
        %v1784 = vmul.f32 %v1423, %v1730
        %v1785 = vmul.f32 %v1426, %v1730
        %v1786 = vmul.f32 %v1431, %v1730
        %v1787 = vmul.f32 %v1434, %v1730
        %v1788 = vmul.f32 %v1439, %v1730
        %v1789 = vmul.f32 %v1442, %v1730
        %v1790 = vmul.f32 %v1447, %v1730
        %v1791 = vmul.f32 %v1450, %v1730
        %v1792 = vmul.f32 %v1455, %v1730
        %v1793 = vmul.f32 %v1458, %v1730
        %v1794 = vmul.f32 %v1463, %v1730
        %v1795 = vmul.f32 %v1466, %v1730
        %v1796 = vmul.f32 %v1471, %v1730
        %v1797 = vmul.f32 %v1474, %v1730
        %v1798 = vmul.f32 %v1479, %v1730
        %v1799 = vmul.f32 %v1482, %v1730
        %v1800 = vmul.f32 %v1487, %v1730
        %v1801 = vmul.f32 %v1490, %v1730
        %v1802 = vmul.f32 %v1495, %v1730
        %v1803 = vmul.f32 %v1498, %v1730
        %v1804 = vmul.f32 %v1503, %v1730
        %v1805 = vmul.f32 %v1506, %v1730
        %v1806 = vmul.f32 %v1511, %v1730
        %v1807 = vmul.f32 %v1514, %v1730
        %v1808 = vmul.f32 %v1519, %v1730
        %v1809 = vmul.f32 %v1522, %v1730
        %v1810 = vmul.f32 %v1527, %v1730
        %v1811 = vmul.f32 %v1530, %v1730
        %v1812 = vmul.f32 %v1535, %v1730
        %v1813 = vmul.f32 %v1538, %v1730
        %v1814 = vmul.f32 %v1543, %v1730
        %v1815 = vmul.f32 %v1546, %v1730
        %v1816 = vmul.f32 %v1551, %v1730
        %v1817 = vmul.f32 %v1554, %v1730
        %v1818 = vmul.f32 %v1559, %v1730
        %v1819 = vmul.f32 %v1562, %v1730
        %v1820 = vmul.f32 %v1567, %v1730
        %v1821 = vmul.f32 %v1570, %v1730
        %v1822 = vmul.f32 %v1575, %v1730
        %v1823 = vmul.f32 %v1578, %v1730
        %v1824 = vmul.f32 %v1583, %v1730
        %v1825 = vmul.f32 %v1586, %v1730
        %v1826 = vmul.f32 %v1591, %v1730
        %v1827 = vmul.f32 %v1594, %v1730
        %v1828 = vmul.f32 %v1599, %v1730
        %v1829 = vmul.f32 %v1602, %v1730
        %v1830 = vmul.f32 %v1607, %v1730
        %v1831 = vmul.f32 %v1610, %v1730
        %v1832 = vmul.f32 %v1615, %v1730
        %v1833 = vmul.f32 %v1618, %v1730
        %v1834 = vmul.f32 %v1623, %v1730
        %v1835 = vmul.f32 %v1626, %v1730
        %v1836 = vmul.f32 %v1631, %v1730
        %v1837 = vmul.f32 %v1634, %v1730
        %v1838 = vmul.f32 %v1639, %v1730
        %v1839 = vmul.f32 %v1642, %v1730
        %v1840 = vmul.f32 %v1647, %v1730
        %v1841 = vmul.f32 %v1650, %v1730
        %v1842 = vmul.f32 %v1655, %v1730
        %v1843 = vmul.f32 %v1658, %v1730
        %v1844 = vmul.f32 %v1663, %v1730
        %v1845 = vmul.f32 %v1666, %v1730
        %v1846 = vmul.f32 %v1671, %v1730
        %v1847 = vmul.f32 %v1674, %v1730
        %v1848 = vmul.f32 %v1679, %v1730
        %v1849 = vmul.f32 %v1682, %v1730
        %v1850 = vmul.f32 %v1687, %v1730
        %v1851 = vmul.f32 %v1690, %v1730
        %v1852 = vmul.f32 %v1695, %v1730
        %v1853 = vmul.f32 %v1698, %v1730
        %v1854 = vmul.f32 %v1703, %v1730
        %v1855 = vmul.f32 %v1706, %v1730
        %v1856 = vmul.f32 %v1711, %v1730
        %v1857 = vmul.f32 %v1714, %v1730
        %v1858 = vmul.f32 %v1719, %v1730
        %v1859 = vmul.f32 %v1722, %v1730
        %v1860 = vld [vmem:[%s281] sm:$0x1]
        %v1862 = vlaneseq
        %v1863 = vshrl.u32 %v1862, 7
        %v1864 = vsub.s32 0, %v1863
        %v1865 = vrot.slane %v1860, %v1864
        %v1867 = vadd.f32 %v1732, %v1865
        %v1868 = vadd.f32 %v1733, %v1865
        %v1869 = vadd.f32 %v1734, %v1865
        %v1870 = vadd.f32 %v1735, %v1865
        %v1871 = vadd.f32 %v1736, %v1865
        %v1872 = vadd.f32 %v1737, %v1865
        %v1873 = vadd.f32 %v1738, %v1865
        %v1874 = vadd.f32 %v1739, %v1865
        %v1875 = vadd.f32 %v1740, %v1865
        %v1876 = vadd.f32 %v1741, %v1865
        %v1877 = vadd.f32 %v1742, %v1865
        %v1878 = vadd.f32 %v1743, %v1865
        %v1879 = vadd.f32 %v1744, %v1865
        %v1880 = vadd.f32 %v1745, %v1865
        %v1881 = vadd.f32 %v1746, %v1865
        %v1882 = vadd.f32 %v1747, %v1865
        %v1883 = vadd.f32 %v1748, %v1865
        %v1884 = vadd.f32 %v1749, %v1865
        %v1885 = vadd.f32 %v1750, %v1865
        %v1886 = vadd.f32 %v1751, %v1865
        %v1887 = vadd.f32 %v1752, %v1865
        %v1888 = vadd.f32 %v1753, %v1865
        %v1889 = vadd.f32 %v1754, %v1865
        %v1890 = vadd.f32 %v1755, %v1865
        %v1891 = vadd.f32 %v1756, %v1865
        %v1892 = vadd.f32 %v1757, %v1865
        %v1893 = vadd.f32 %v1758, %v1865
        %v1894 = vadd.f32 %v1759, %v1865
        %v1895 = vadd.f32 %v1760, %v1865
        %v1896 = vadd.f32 %v1761, %v1865
        %v1897 = vadd.f32 %v1762, %v1865
        %v1898 = vadd.f32 %v1763, %v1865
        %v1899 = vadd.f32 %v1764, %v1865
        %v1900 = vadd.f32 %v1765, %v1865
        %v1901 = vadd.f32 %v1766, %v1865
        %v1902 = vadd.f32 %v1767, %v1865
        %v1903 = vadd.f32 %v1768, %v1865
        %v1904 = vadd.f32 %v1769, %v1865
        %v1905 = vadd.f32 %v1770, %v1865
        %v1906 = vadd.f32 %v1771, %v1865
        %v1907 = vadd.f32 %v1772, %v1865
        %v1908 = vadd.f32 %v1773, %v1865
        %v1909 = vadd.f32 %v1774, %v1865
        %v1910 = vadd.f32 %v1775, %v1865
        %v1911 = vadd.f32 %v1776, %v1865
        %v1912 = vadd.f32 %v1777, %v1865
        %v1913 = vadd.f32 %v1778, %v1865
        %v1914 = vadd.f32 %v1779, %v1865
        %v1915 = vadd.f32 %v1780, %v1865
        %v1916 = vadd.f32 %v1781, %v1865
        %v1917 = vadd.f32 %v1782, %v1865
        %v1918 = vadd.f32 %v1783, %v1865
        %v1919 = vadd.f32 %v1784, %v1865
        %v1920 = vadd.f32 %v1785, %v1865
        %v1921 = vadd.f32 %v1786, %v1865
        %v1922 = vadd.f32 %v1787, %v1865
        %v1923 = vadd.f32 %v1788, %v1865
        %v1924 = vadd.f32 %v1789, %v1865
        %v1925 = vadd.f32 %v1790, %v1865
        %v1926 = vadd.f32 %v1791, %v1865
        %v1927 = vadd.f32 %v1792, %v1865
        %v1928 = vadd.f32 %v1793, %v1865
        %v1929 = vadd.f32 %v1794, %v1865
        %v1930 = vadd.f32 %v1795, %v1865
        %v1931 = vadd.f32 %v1796, %v1865
        %v1932 = vadd.f32 %v1797, %v1865
        %v1933 = vadd.f32 %v1798, %v1865
        %v1934 = vadd.f32 %v1799, %v1865
        %v1935 = vadd.f32 %v1800, %v1865
        %v1936 = vadd.f32 %v1801, %v1865
        %v1937 = vadd.f32 %v1802, %v1865
        %v1938 = vadd.f32 %v1803, %v1865
        %v1939 = vadd.f32 %v1804, %v1865
        %v1940 = vadd.f32 %v1805, %v1865
        %v1941 = vadd.f32 %v1806, %v1865
        %v1942 = vadd.f32 %v1807, %v1865
        %v1943 = vadd.f32 %v1808, %v1865
        %v1944 = vadd.f32 %v1809, %v1865
        %v1945 = vadd.f32 %v1810, %v1865
        %v1946 = vadd.f32 %v1811, %v1865
        %v1947 = vadd.f32 %v1812, %v1865
        %v1948 = vadd.f32 %v1813, %v1865
        %v1949 = vadd.f32 %v1814, %v1865
        %v1950 = vadd.f32 %v1815, %v1865
        %v1951 = vadd.f32 %v1816, %v1865
        %v1952 = vadd.f32 %v1817, %v1865
        %v1953 = vadd.f32 %v1818, %v1865
        %v1954 = vadd.f32 %v1819, %v1865
        %v1955 = vadd.f32 %v1820, %v1865
        %v1956 = vadd.f32 %v1821, %v1865
        %v1957 = vadd.f32 %v1822, %v1865
        %v1958 = vadd.f32 %v1823, %v1865
        %v1959 = vadd.f32 %v1824, %v1865
        %v1960 = vadd.f32 %v1825, %v1865
        %v1961 = vadd.f32 %v1826, %v1865
        %v1962 = vadd.f32 %v1827, %v1865
        %v1963 = vadd.f32 %v1828, %v1865
        %v1964 = vadd.f32 %v1829, %v1865
        %v1965 = vadd.f32 %v1830, %v1865
        %v1966 = vadd.f32 %v1831, %v1865
        %v1967 = vadd.f32 %v1832, %v1865
        %v1968 = vadd.f32 %v1833, %v1865
        %v1969 = vadd.f32 %v1834, %v1865
        %v1970 = vadd.f32 %v1835, %v1865
        %v1971 = vadd.f32 %v1836, %v1865
        %v1972 = vadd.f32 %v1837, %v1865
        %v1973 = vadd.f32 %v1838, %v1865
        %v1974 = vadd.f32 %v1839, %v1865
        %v1975 = vadd.f32 %v1840, %v1865
        %v1976 = vadd.f32 %v1841, %v1865
        %v1977 = vadd.f32 %v1842, %v1865
        %v1978 = vadd.f32 %v1843, %v1865
        %v1979 = vadd.f32 %v1844, %v1865
        %v1980 = vadd.f32 %v1845, %v1865
        %v1981 = vadd.f32 %v1846, %v1865
        %v1982 = vadd.f32 %v1847, %v1865
        %v1983 = vadd.f32 %v1848, %v1865
        %v1984 = vadd.f32 %v1849, %v1865
        %v1985 = vadd.f32 %v1850, %v1865
        %v1986 = vadd.f32 %v1851, %v1865
        %v1987 = vadd.f32 %v1852, %v1865
        %v1988 = vadd.f32 %v1853, %v1865
        %v1989 = vadd.f32 %v1854, %v1865
        %v1990 = vadd.f32 %v1855, %v1865
        %v1991 = vadd.f32 %v1856, %v1865
        %v1992 = vadd.f32 %v1857, %v1865
        %v1993 = vadd.f32 %v1858, %v1865
        %v1994 = vadd.f32 %v1859, %v1865
        %v1995 = vmax.f32 %v1867, 0.0
        %v1996 = vmax.f32 %v1868, 0.0
        %v1997 = vmax.f32 %v1869, 0.0
        %v1998 = vmax.f32 %v1870, 0.0
        %v1999 = vmax.f32 %v1871, 0.0
        %v2000 = vmax.f32 %v1872, 0.0
        %v2001 = vmax.f32 %v1873, 0.0
        %v2002 = vmax.f32 %v1874, 0.0
        %v2003 = vmax.f32 %v1875, 0.0
        %v2004 = vmax.f32 %v1876, 0.0
        %v2005 = vmax.f32 %v1877, 0.0
        %v2006 = vmax.f32 %v1878, 0.0
        %v2007 = vmax.f32 %v1879, 0.0
        %v2008 = vmax.f32 %v1880, 0.0
        %v2009 = vmax.f32 %v1881, 0.0
        %v2010 = vmax.f32 %v1882, 0.0
        %v2011 = vmax.f32 %v1883, 0.0
        %v2012 = vmax.f32 %v1884, 0.0
        %v2013 = vmax.f32 %v1885, 0.0
        %v2014 = vmax.f32 %v1886, 0.0
        %v2015 = vmax.f32 %v1887, 0.0
        %v2016 = vmax.f32 %v1888, 0.0
        %v2017 = vmax.f32 %v1889, 0.0
        %v2018 = vmax.f32 %v1890, 0.0
        %v2019 = vmax.f32 %v1891, 0.0
        %v2020 = vmax.f32 %v1892, 0.0
        %v2021 = vmax.f32 %v1893, 0.0
        %v2022 = vmax.f32 %v1894, 0.0
        %v2023 = vmax.f32 %v1895, 0.0
        %v2024 = vmax.f32 %v1896, 0.0
        %v2025 = vmax.f32 %v1897, 0.0
        %v2026 = vmax.f32 %v1898, 0.0
        %v2027 = vmax.f32 %v1899, 0.0
        %v2028 = vmax.f32 %v1900, 0.0
        %v2029 = vmax.f32 %v1901, 0.0
        %v2030 = vmax.f32 %v1902, 0.0
        %v2031 = vmax.f32 %v1903, 0.0
        %v2032 = vmax.f32 %v1904, 0.0
        %v2033 = vmax.f32 %v1905, 0.0
        %v2034 = vmax.f32 %v1906, 0.0
        %v2035 = vmax.f32 %v1907, 0.0
        %v2036 = vmax.f32 %v1908, 0.0
        %v2037 = vmax.f32 %v1909, 0.0
        %v2038 = vmax.f32 %v1910, 0.0
        %v2039 = vmax.f32 %v1911, 0.0
        %v2040 = vmax.f32 %v1912, 0.0
        %v2041 = vmax.f32 %v1913, 0.0
        %v2042 = vmax.f32 %v1914, 0.0
        %v2043 = vmax.f32 %v1915, 0.0
        %v2044 = vmax.f32 %v1916, 0.0
        %v2045 = vmax.f32 %v1917, 0.0
        %v2046 = vmax.f32 %v1918, 0.0
        %v2047 = vmax.f32 %v1919, 0.0
        %v2048 = vmax.f32 %v1920, 0.0
        %v2049 = vmax.f32 %v1921, 0.0
        %v2050 = vmax.f32 %v1922, 0.0
        %v2051 = vmax.f32 %v1923, 0.0
        %v2052 = vmax.f32 %v1924, 0.0
        %v2053 = vmax.f32 %v1925, 0.0
        %v2054 = vmax.f32 %v1926, 0.0
        %v2055 = vmax.f32 %v1927, 0.0
        %v2056 = vmax.f32 %v1928, 0.0
        %v2057 = vmax.f32 %v1929, 0.0
        %v2058 = vmax.f32 %v1930, 0.0
        %v2059 = vmax.f32 %v1931, 0.0
        %v2060 = vmax.f32 %v1932, 0.0
        %v2061 = vmax.f32 %v1933, 0.0
        %v2062 = vmax.f32 %v1934, 0.0
        %v2063 = vmax.f32 %v1935, 0.0
        %v2064 = vmax.f32 %v1936, 0.0
        %v2065 = vmax.f32 %v1937, 0.0
        %v2066 = vmax.f32 %v1938, 0.0
        %v2067 = vmax.f32 %v1939, 0.0
        %v2068 = vmax.f32 %v1940, 0.0
        %v2069 = vmax.f32 %v1941, 0.0
        %v2070 = vmax.f32 %v1942, 0.0
        %v2071 = vmax.f32 %v1943, 0.0
        %v2072 = vmax.f32 %v1944, 0.0
        %v2073 = vmax.f32 %v1945, 0.0
        %v2074 = vmax.f32 %v1946, 0.0
        %v2075 = vmax.f32 %v1947, 0.0
        %v2076 = vmax.f32 %v1948, 0.0
        %v2077 = vmax.f32 %v1949, 0.0
        %v2078 = vmax.f32 %v1950, 0.0
        %v2079 = vmax.f32 %v1951, 0.0
        %v2080 = vmax.f32 %v1952, 0.0
        %v2081 = vmax.f32 %v1953, 0.0
        %v2082 = vmax.f32 %v1954, 0.0
        %v2083 = vmax.f32 %v1955, 0.0
        %v2084 = vmax.f32 %v1956, 0.0
        %v2085 = vmax.f32 %v1957, 0.0
        %v2086 = vmax.f32 %v1958, 0.0
        %v2087 = vmax.f32 %v1959, 0.0
        %v2088 = vmax.f32 %v1960, 0.0
        %v2089 = vmax.f32 %v1961, 0.0
        %v2090 = vmax.f32 %v1962, 0.0
        %v2091 = vmax.f32 %v1963, 0.0
        %v2092 = vmax.f32 %v1964, 0.0
        %v2093 = vmax.f32 %v1965, 0.0
        %v2094 = vmax.f32 %v1966, 0.0
        %v2095 = vmax.f32 %v1967, 0.0
        %v2096 = vmax.f32 %v1968, 0.0
        %v2097 = vmax.f32 %v1969, 0.0
        %v2098 = vmax.f32 %v1970, 0.0
        %v2099 = vmax.f32 %v1971, 0.0
        %v2100 = vmax.f32 %v1972, 0.0
        %v2101 = vmax.f32 %v1973, 0.0
        %v2102 = vmax.f32 %v1974, 0.0
        %v2103 = vmax.f32 %v1975, 0.0
        %v2104 = vmax.f32 %v1976, 0.0
        %v2105 = vmax.f32 %v1977, 0.0
        %v2106 = vmax.f32 %v1978, 0.0
        %v2107 = vmax.f32 %v1979, 0.0
        %v2108 = vmax.f32 %v1980, 0.0
        %v2109 = vmax.f32 %v1981, 0.0
        %v2110 = vmax.f32 %v1982, 0.0
        %v2111 = vmax.f32 %v1983, 0.0
        %v2112 = vmax.f32 %v1984, 0.0
        %v2113 = vmax.f32 %v1985, 0.0
        %v2114 = vmax.f32 %v1986, 0.0
        %v2115 = vmax.f32 %v1987, 0.0
        %v2116 = vmax.f32 %v1988, 0.0
        %v2117 = vmax.f32 %v1989, 0.0
        %v2118 = vmax.f32 %v1990, 0.0
        %v2119 = vmax.f32 %v1991, 0.0
        %v2120 = vmax.f32 %v1992, 0.0
        %v2121 = vmax.f32 %v1993, 0.0
        %v2122 = vmax.f32 %v1994, 0.0
        %v2123 = vpack.c.bf16 %v1996, %v1995
        %v2124 = vpack.c.bf16 %v1998, %v1997
        %v2125 = vpack.c.bf16 %v2000, %v1999
        %v2126 = vpack.c.bf16 %v2002, %v2001
        %v2127 = vpack.c.bf16 %v2004, %v2003
        %v2128 = vpack.c.bf16 %v2006, %v2005
        %v2129 = vpack.c.bf16 %v2008, %v2007
        %v2130 = vpack.c.bf16 %v2010, %v2009
        %v2131 = vpack.c.bf16 %v2012, %v2011
        %v2132 = vpack.c.bf16 %v2014, %v2013
        %v2133 = vpack.c.bf16 %v2016, %v2015
        %v2134 = vpack.c.bf16 %v2018, %v2017
        %v2135 = vpack.c.bf16 %v2020, %v2019
        %v2136 = vpack.c.bf16 %v2022, %v2021
        %v2137 = vpack.c.bf16 %v2024, %v2023
        %v2138 = vpack.c.bf16 %v2026, %v2025
        %v2139 = vpack.c.bf16 %v2028, %v2027
        %v2140 = vpack.c.bf16 %v2030, %v2029
        %v2141 = vpack.c.bf16 %v2032, %v2031
        %v2142 = vpack.c.bf16 %v2034, %v2033
        %v2143 = vpack.c.bf16 %v2036, %v2035
        %v2144 = vpack.c.bf16 %v2038, %v2037
        %v2145 = vpack.c.bf16 %v2040, %v2039
        %v2146 = vpack.c.bf16 %v2042, %v2041
        %v2147 = vpack.c.bf16 %v2044, %v2043
        %v2148 = vpack.c.bf16 %v2046, %v2045
        %v2149 = vpack.c.bf16 %v2048, %v2047
        %v2150 = vpack.c.bf16 %v2050, %v2049
        %v2151 = vpack.c.bf16 %v2052, %v2051
        %v2152 = vpack.c.bf16 %v2054, %v2053
        %v2153 = vpack.c.bf16 %v2056, %v2055
        %v2154 = vpack.c.bf16 %v2058, %v2057
        %v2155 = vpack.c.bf16 %v2060, %v2059
        %v2156 = vpack.c.bf16 %v2062, %v2061
        %v2157 = vpack.c.bf16 %v2064, %v2063
        %v2158 = vpack.c.bf16 %v2066, %v2065
        %v2159 = vpack.c.bf16 %v2068, %v2067
        %v2160 = vpack.c.bf16 %v2070, %v2069
        %v2161 = vpack.c.bf16 %v2072, %v2071
        %v2162 = vpack.c.bf16 %v2074, %v2073
        %v2163 = vpack.c.bf16 %v2076, %v2075
        %v2164 = vpack.c.bf16 %v2078, %v2077
        %v2165 = vpack.c.bf16 %v2080, %v2079
        %v2166 = vpack.c.bf16 %v2082, %v2081
        %v2167 = vpack.c.bf16 %v2084, %v2083
        %v2168 = vpack.c.bf16 %v2086, %v2085
        %v2169 = vpack.c.bf16 %v2088, %v2087
        %v2170 = vpack.c.bf16 %v2090, %v2089
        %v2171 = vpack.c.bf16 %v2092, %v2091
        %v2172 = vpack.c.bf16 %v2094, %v2093
        %v2173 = vpack.c.bf16 %v2096, %v2095
        %v2174 = vpack.c.bf16 %v2098, %v2097
        %v2175 = vpack.c.bf16 %v2100, %v2099
        %v2176 = vpack.c.bf16 %v2102, %v2101
        %v2177 = vpack.c.bf16 %v2104, %v2103
        %v2178 = vpack.c.bf16 %v2106, %v2105
        %v2179 = vpack.c.bf16 %v2108, %v2107
        %v2180 = vpack.c.bf16 %v2110, %v2109
        %v2181 = vpack.c.bf16 %v2112, %v2111
        %v2182 = vpack.c.bf16 %v2114, %v2113
        %v2183 = vpack.c.bf16 %v2116, %v2115
        %v2184 = vpack.c.bf16 %v2118, %v2117
        %v2185 = vpack.c.bf16 %v2120, %v2119
        %v2186 = vpack.c.bf16 %v2122, %v2121
        %v2251 = vunpack.c.l.b16 %v2123
        %v2252 = vunpack.c.h.b16 %v2123
        %v2253 = vunpack.c.l.b16 %v2124
        %v2254 = vunpack.c.h.b16 %v2124
        %v2255 = vunpack.c.l.b16 %v2125
        %v2256 = vunpack.c.h.b16 %v2125
        %v2257 = vunpack.c.l.b16 %v2126
        %v2258 = vunpack.c.h.b16 %v2126
        %v2259 = vunpack.c.l.b16 %v2127
        %v2260 = vunpack.c.h.b16 %v2127
        %v2261 = vunpack.c.l.b16 %v2128
        %v2262 = vunpack.c.h.b16 %v2128
        %v2263 = vunpack.c.l.b16 %v2129
        %v2264 = vunpack.c.h.b16 %v2129
        %v2265 = vunpack.c.l.b16 %v2130
        %v2266 = vunpack.c.h.b16 %v2130
        %v2267 = vunpack.c.l.b16 %v2131
        %v2268 = vunpack.c.h.b16 %v2131
        %v2269 = vunpack.c.l.b16 %v2132
        %v2270 = vunpack.c.h.b16 %v2132
        %v2271 = vunpack.c.l.b16 %v2133
        %v2272 = vunpack.c.h.b16 %v2133
        %v2273 = vunpack.c.l.b16 %v2134
        %v2274 = vunpack.c.h.b16 %v2134
        %v2275 = vunpack.c.l.b16 %v2135
        %v2276 = vunpack.c.h.b16 %v2135
        %v2277 = vunpack.c.l.b16 %v2136
        %v2278 = vunpack.c.h.b16 %v2136
        %v2279 = vunpack.c.l.b16 %v2137
        %v2280 = vunpack.c.h.b16 %v2137
        %v2281 = vunpack.c.l.b16 %v2138
        %v2282 = vunpack.c.h.b16 %v2138
        %v2283 = vunpack.c.l.b16 %v2139
        %v2284 = vunpack.c.h.b16 %v2139
        %v2285 = vunpack.c.l.b16 %v2140
        %v2286 = vunpack.c.h.b16 %v2140
        %v2287 = vunpack.c.l.b16 %v2141
        %v2288 = vunpack.c.h.b16 %v2141
        %v2289 = vunpack.c.l.b16 %v2142
        %v2290 = vunpack.c.h.b16 %v2142
        %v2291 = vunpack.c.l.b16 %v2143
        %v2292 = vunpack.c.h.b16 %v2143
        %v2293 = vunpack.c.l.b16 %v2144
        %v2294 = vunpack.c.h.b16 %v2144
        %v2295 = vunpack.c.l.b16 %v2145
        %v2296 = vunpack.c.h.b16 %v2145
        %v2297 = vunpack.c.l.b16 %v2146
        %v2298 = vunpack.c.h.b16 %v2146
        %v2299 = vunpack.c.l.b16 %v2147
        %v2300 = vunpack.c.h.b16 %v2147
        %v2301 = vunpack.c.l.b16 %v2148
        %v2302 = vunpack.c.h.b16 %v2148
        %v2303 = vunpack.c.l.b16 %v2149
        %v2304 = vunpack.c.h.b16 %v2149
        %v2305 = vunpack.c.l.b16 %v2150
        %v2306 = vunpack.c.h.b16 %v2150
        %v2307 = vunpack.c.l.b16 %v2151
        %v2308 = vunpack.c.h.b16 %v2151
        %v2309 = vunpack.c.l.b16 %v2152
        %v2310 = vunpack.c.h.b16 %v2152
        %v2311 = vunpack.c.l.b16 %v2153
        %v2312 = vunpack.c.h.b16 %v2153
        %v2313 = vunpack.c.l.b16 %v2154
        %v2314 = vunpack.c.h.b16 %v2154
        %v2315 = vunpack.c.l.b16 %v2155
        %v2316 = vunpack.c.h.b16 %v2155
        %v2317 = vunpack.c.l.b16 %v2156
        %v2318 = vunpack.c.h.b16 %v2156
        %v2319 = vunpack.c.l.b16 %v2157
        %v2320 = vunpack.c.h.b16 %v2157
        %v2321 = vunpack.c.l.b16 %v2158
        %v2322 = vunpack.c.h.b16 %v2158
        %v2323 = vunpack.c.l.b16 %v2159
        %v2324 = vunpack.c.h.b16 %v2159
        %v2325 = vunpack.c.l.b16 %v2160
        %v2326 = vunpack.c.h.b16 %v2160
        %v2327 = vunpack.c.l.b16 %v2161
        %v2328 = vunpack.c.h.b16 %v2161
        %v2329 = vunpack.c.l.b16 %v2162
        %v2330 = vunpack.c.h.b16 %v2162
        %v2331 = vunpack.c.l.b16 %v2163
        %v2332 = vunpack.c.h.b16 %v2163
        %v2333 = vunpack.c.l.b16 %v2164
        %v2334 = vunpack.c.h.b16 %v2164
        %v2335 = vunpack.c.l.b16 %v2165
        %v2336 = vunpack.c.h.b16 %v2165
        %v2337 = vunpack.c.l.b16 %v2166
        %v2338 = vunpack.c.h.b16 %v2166
        %v2339 = vunpack.c.l.b16 %v2167
        %v2340 = vunpack.c.h.b16 %v2167
        %v2341 = vunpack.c.l.b16 %v2168
        %v2342 = vunpack.c.h.b16 %v2168
        %v2343 = vunpack.c.l.b16 %v2169
        %v2344 = vunpack.c.h.b16 %v2169
        %v2345 = vunpack.c.l.b16 %v2170
        %v2346 = vunpack.c.h.b16 %v2170
        %v2347 = vunpack.c.l.b16 %v2171
        %v2348 = vunpack.c.h.b16 %v2171
        %v2349 = vunpack.c.l.b16 %v2172
        %v2350 = vunpack.c.h.b16 %v2172
        %v2351 = vunpack.c.l.b16 %v2173
        %v2352 = vunpack.c.h.b16 %v2173
        %v2353 = vunpack.c.l.b16 %v2174
        %v2354 = vunpack.c.h.b16 %v2174
        %v2355 = vunpack.c.l.b16 %v2175
        %v2356 = vunpack.c.h.b16 %v2175
        %v2357 = vunpack.c.l.b16 %v2176
        %v2358 = vunpack.c.h.b16 %v2176
        %v2359 = vunpack.c.l.b16 %v2177
        %v2360 = vunpack.c.h.b16 %v2177
        %v2361 = vunpack.c.l.b16 %v2178
        %v2362 = vunpack.c.h.b16 %v2178
        %v2363 = vunpack.c.l.b16 %v2179
        %v2364 = vunpack.c.h.b16 %v2179
        %v2365 = vunpack.c.l.b16 %v2180
        %v2366 = vunpack.c.h.b16 %v2180
        %v2367 = vunpack.c.l.b16 %v2181
        %v2368 = vunpack.c.h.b16 %v2181
        %v2369 = vunpack.c.l.b16 %v2182
        %v2370 = vunpack.c.h.b16 %v2182
        %v2371 = vunpack.c.l.b16 %v2183
        %v2372 = vunpack.c.h.b16 %v2183
        %v2373 = vunpack.c.l.b16 %v2184
        %v2374 = vunpack.c.h.b16 %v2184
        %v2375 = vunpack.c.l.b16 %v2185
        %v2376 = vunpack.c.h.b16 %v2185
        %v2377 = vunpack.c.l.b16 %v2186
        %v2378 = vunpack.c.h.b16 %v2186
        %v2379 = vpack.c.b16 %v2251, %v2251
        %v2380 = vpack.c.b16 %v2252, %v2252
        %v2381 = vpack.c.b16 %v2253, %v2253
        %v2382 = vpack.c.b16 %v2254, %v2254
        %v2383 = vpack.c.b16 %v2255, %v2255
        %v2384 = vpack.c.b16 %v2256, %v2256
        %v2385 = vpack.c.b16 %v2257, %v2257
        %v2386 = vpack.c.b16 %v2258, %v2258
        %v2387 = vpack.c.b16 %v2259, %v2259
        %v2388 = vpack.c.b16 %v2260, %v2260
        %v2389 = vpack.c.b16 %v2261, %v2261
        %v2390 = vpack.c.b16 %v2262, %v2262
        %v2391 = vpack.c.b16 %v2263, %v2263
        %v2392 = vpack.c.b16 %v2264, %v2264
        %v2393 = vpack.c.b16 %v2265, %v2265
        %v2394 = vpack.c.b16 %v2266, %v2266
        %v2395 = vpack.c.b16 %v2267, %v2267
        %v2396 = vpack.c.b16 %v2268, %v2268
        %v2397 = vpack.c.b16 %v2269, %v2269
        %v2398 = vpack.c.b16 %v2270, %v2270
        %v2399 = vpack.c.b16 %v2271, %v2271
        %v2400 = vpack.c.b16 %v2272, %v2272
        %v2401 = vpack.c.b16 %v2273, %v2273
        %v2402 = vpack.c.b16 %v2274, %v2274
        %v2403 = vpack.c.b16 %v2275, %v2275
        %v2404 = vpack.c.b16 %v2276, %v2276
        %v2405 = vpack.c.b16 %v2277, %v2277
        %v2406 = vpack.c.b16 %v2278, %v2278
        %v2407 = vpack.c.b16 %v2279, %v2279
        %v2408 = vpack.c.b16 %v2280, %v2280
        %v2409 = vpack.c.b16 %v2281, %v2281
        %v2410 = vpack.c.b16 %v2282, %v2282
        %v2411 = vpack.c.b16 %v2283, %v2283
        %v2412 = vpack.c.b16 %v2284, %v2284
        %v2413 = vpack.c.b16 %v2285, %v2285
        %v2414 = vpack.c.b16 %v2286, %v2286
        %v2415 = vpack.c.b16 %v2287, %v2287
        %v2416 = vpack.c.b16 %v2288, %v2288
        %v2417 = vpack.c.b16 %v2289, %v2289
        %v2418 = vpack.c.b16 %v2290, %v2290
        %v2419 = vpack.c.b16 %v2291, %v2291
        %v2420 = vpack.c.b16 %v2292, %v2292
        %v2421 = vpack.c.b16 %v2293, %v2293
        %v2422 = vpack.c.b16 %v2294, %v2294
        %v2423 = vpack.c.b16 %v2295, %v2295
        %v2424 = vpack.c.b16 %v2296, %v2296
        %v2425 = vpack.c.b16 %v2297, %v2297
        %v2426 = vpack.c.b16 %v2298, %v2298
        %v2427 = vpack.c.b16 %v2299, %v2299
        %v2428 = vpack.c.b16 %v2300, %v2300
        %v2429 = vpack.c.b16 %v2301, %v2301
        %v2430 = vpack.c.b16 %v2302, %v2302
        %v2431 = vpack.c.b16 %v2303, %v2303
        %v2432 = vpack.c.b16 %v2304, %v2304
        %v2433 = vpack.c.b16 %v2305, %v2305
        %v2434 = vpack.c.b16 %v2306, %v2306
        %v2435 = vpack.c.b16 %v2307, %v2307
        %v2436 = vpack.c.b16 %v2308, %v2308
        %v2437 = vpack.c.b16 %v2309, %v2309
        %v2438 = vpack.c.b16 %v2310, %v2310
        %v2439 = vpack.c.b16 %v2311, %v2311
        %v2440 = vpack.c.b16 %v2312, %v2312
        %v2441 = vpack.c.b16 %v2313, %v2313
        %v2442 = vpack.c.b16 %v2314, %v2314
        %v2443 = vpack.c.b16 %v2315, %v2315
        %v2444 = vpack.c.b16 %v2316, %v2316
        %v2445 = vpack.c.b16 %v2317, %v2317
        %v2446 = vpack.c.b16 %v2318, %v2318
        %v2447 = vpack.c.b16 %v2319, %v2319
        %v2448 = vpack.c.b16 %v2320, %v2320
        %v2449 = vpack.c.b16 %v2321, %v2321
        %v2450 = vpack.c.b16 %v2322, %v2322
        %v2451 = vpack.c.b16 %v2323, %v2323
        %v2452 = vpack.c.b16 %v2324, %v2324
        %v2453 = vpack.c.b16 %v2325, %v2325
        %v2454 = vpack.c.b16 %v2326, %v2326
        %v2455 = vpack.c.b16 %v2327, %v2327
        %v2456 = vpack.c.b16 %v2328, %v2328
        %v2457 = vpack.c.b16 %v2329, %v2329
        %v2458 = vpack.c.b16 %v2330, %v2330
        %v2459 = vpack.c.b16 %v2331, %v2331
        %v2460 = vpack.c.b16 %v2332, %v2332
        %v2461 = vpack.c.b16 %v2333, %v2333
        %v2462 = vpack.c.b16 %v2334, %v2334
        %v2463 = vpack.c.b16 %v2335, %v2335
        %v2464 = vpack.c.b16 %v2336, %v2336
        %v2465 = vpack.c.b16 %v2337, %v2337
        %v2466 = vpack.c.b16 %v2338, %v2338
        %v2467 = vpack.c.b16 %v2339, %v2339
        %v2468 = vpack.c.b16 %v2340, %v2340
        %v2469 = vpack.c.b16 %v2341, %v2341
        %v2470 = vpack.c.b16 %v2342, %v2342
        %v2471 = vpack.c.b16 %v2343, %v2343
        %v2472 = vpack.c.b16 %v2344, %v2344
        %v2473 = vpack.c.b16 %v2345, %v2345
        %v2474 = vpack.c.b16 %v2346, %v2346
        %v2475 = vpack.c.b16 %v2347, %v2347
        %v2476 = vpack.c.b16 %v2348, %v2348
        %v2477 = vpack.c.b16 %v2349, %v2349
        %v2478 = vpack.c.b16 %v2350, %v2350
        %v2479 = vpack.c.b16 %v2351, %v2351
        %v2480 = vpack.c.b16 %v2352, %v2352
        %v2481 = vpack.c.b16 %v2353, %v2353
        %v2482 = vpack.c.b16 %v2354, %v2354
        %v2483 = vpack.c.b16 %v2355, %v2355
        %v2484 = vpack.c.b16 %v2356, %v2356
        %v2485 = vpack.c.b16 %v2357, %v2357
        %v2486 = vpack.c.b16 %v2358, %v2358
        %v2487 = vpack.c.b16 %v2359, %v2359
        %v2488 = vpack.c.b16 %v2360, %v2360
        %v2489 = vpack.c.b16 %v2361, %v2361
        %v2490 = vpack.c.b16 %v2362, %v2362
        %v2491 = vpack.c.b16 %v2363, %v2363
        %v2492 = vpack.c.b16 %v2364, %v2364
        %v2493 = vpack.c.b16 %v2365, %v2365
        %v2494 = vpack.c.b16 %v2366, %v2366
        %v2495 = vpack.c.b16 %v2367, %v2367
        %v2496 = vpack.c.b16 %v2368, %v2368
        %v2497 = vpack.c.b16 %v2369, %v2369
        %v2498 = vpack.c.b16 %v2370, %v2370
        %v2499 = vpack.c.b16 %v2371, %v2371
        %v2500 = vpack.c.b16 %v2372, %v2372
        %v2501 = vpack.c.b16 %v2373, %v2373
        %v2502 = vpack.c.b16 %v2374, %v2374
        %v2503 = vpack.c.b16 %v2375, %v2375
        %v2504 = vpack.c.b16 %v2376, %v2376
        %v2505 = vpack.c.b16 %v2377, %v2377
        %v2506 = vpack.c.b16 %v2378, %v2378
        %2635 = vst [vmem:[%s274] sm:$0xf] %v2379
        %2636 = vst [vmem:[%s274 + $0x4] sm:$0xf] %v2380
        %2637 = vst [vmem:[%s274 + $0x8] sm:$0xf] %v2381
        %2638 = vst [vmem:[%s274 + $0xc] sm:$0xf] %v2382
        %2639 = vst [vmem:[%s274 + $0x10] sm:$0xf] %v2383
        %2640 = vst [vmem:[%s274 + $0x14] sm:$0xf] %v2384
        %2641 = vst [vmem:[%s274 + $0x18] sm:$0xf] %v2385
        %2642 = vst [vmem:[%s274 + $0x1c] sm:$0xf] %v2386
        %2643 = vst [vmem:[%s274 + $0x20] sm:$0xf] %v2387
        %2644 = vst [vmem:[%s274 + $0x24] sm:$0xf] %v2388
        %2645 = vst [vmem:[%s274 + $0x28] sm:$0xf] %v2389
        %2646 = vst [vmem:[%s274 + $0x2c] sm:$0xf] %v2390
        %2647 = vst [vmem:[%s274 + $0x30] sm:$0xf] %v2391
        %2648 = vst [vmem:[%s274 + $0x34] sm:$0xf] %v2392
        %2649 = vst [vmem:[%s274 + $0x38] sm:$0xf] %v2393
        %2650 = vst [vmem:[%s274 + $0x3c] sm:$0xf] %v2394
        %2651 = vst [vmem:[%s274 + $0x40] sm:$0xf] %v2395
        %2652 = vst [vmem:[%s274 + $0x44] sm:$0xf] %v2396
        %2653 = vst [vmem:[%s274 + $0x48] sm:$0xf] %v2397
        %2654 = vst [vmem:[%s274 + $0x4c] sm:$0xf] %v2398
        %2655 = vst [vmem:[%s274 + $0x50] sm:$0xf] %v2399
        %2656 = vst [vmem:[%s274 + $0x54] sm:$0xf] %v2400
        %2657 = vst [vmem:[%s274 + $0x58] sm:$0xf] %v2401
        %2658 = vst [vmem:[%s274 + $0x5c] sm:$0xf] %v2402
        %2659 = vst [vmem:[%s274 + $0x60] sm:$0xf] %v2403
        %2660 = vst [vmem:[%s274 + $0x64] sm:$0xf] %v2404
        %2661 = vst [vmem:[%s274 + $0x68] sm:$0xf] %v2405
        %2662 = vst [vmem:[%s274 + $0x6c] sm:$0xf] %v2406
        %2663 = vst [vmem:[%s274 + $0x70] sm:$0xf] %v2407
        %2664 = vst [vmem:[%s274 + $0x74] sm:$0xf] %v2408
        %2665 = vst [vmem:[%s274 + $0x78] sm:$0xf] %v2409
        %2666 = vst [vmem:[%s274 + $0x7c] sm:$0xf] %v2410
        %2667 = vst [vmem:[%s274 + $0x80] sm:$0xf] %v2411
        %2668 = vst [vmem:[%s274 + $0x84] sm:$0xf] %v2412
        %2669 = vst [vmem:[%s274 + $0x88] sm:$0xf] %v2413
        %2670 = vst [vmem:[%s274 + $0x8c] sm:$0xf] %v2414
        %2671 = vst [vmem:[%s274 + $0x90] sm:$0xf] %v2415
        %2672 = vst [vmem:[%s274 + $0x94] sm:$0xf] %v2416
        %2673 = vst [vmem:[%s274 + $0x98] sm:$0xf] %v2417
        %2674 = vst [vmem:[%s274 + $0x9c] sm:$0xf] %v2418
        %2675 = vst [vmem:[%s274 + $0xa0] sm:$0xf] %v2419
        %2676 = vst [vmem:[%s274 + $0xa4] sm:$0xf] %v2420
        %2677 = vst [vmem:[%s274 + $0xa8] sm:$0xf] %v2421
        %2678 = vst [vmem:[%s274 + $0xac] sm:$0xf] %v2422
        %2679 = vst [vmem:[%s274 + $0xb0] sm:$0xf] %v2423
        %2680 = vst [vmem:[%s274 + $0xb4] sm:$0xf] %v2424
        %2681 = vst [vmem:[%s274 + $0xb8] sm:$0xf] %v2425
        %2682 = vst [vmem:[%s274 + $0xbc] sm:$0xf] %v2426
        %2683 = vst [vmem:[%s274 + $0xc0] sm:$0xf] %v2427
        %2684 = vst [vmem:[%s274 + $0xc4] sm:$0xf] %v2428
        %2685 = vst [vmem:[%s274 + $0xc8] sm:$0xf] %v2429
        %2686 = vst [vmem:[%s274 + $0xcc] sm:$0xf] %v2430
        %2687 = vst [vmem:[%s274 + $0xd0] sm:$0xf] %v2431
        %2688 = vst [vmem:[%s274 + $0xd4] sm:$0xf] %v2432
        %2689 = vst [vmem:[%s274 + $0xd8] sm:$0xf] %v2433
        %2690 = vst [vmem:[%s274 + $0xdc] sm:$0xf] %v2434
        %2691 = vst [vmem:[%s274 + $0xe0] sm:$0xf] %v2435
        %2692 = vst [vmem:[%s274 + $0xe4] sm:$0xf] %v2436
        %2693 = vst [vmem:[%s274 + $0xe8] sm:$0xf] %v2437
        %2694 = vst [vmem:[%s274 + $0xec] sm:$0xf] %v2438
        %2695 = vst [vmem:[%s274 + $0xf0] sm:$0xf] %v2439
        %2696 = vst [vmem:[%s274 + $0xf4] sm:$0xf] %v2440
        %2697 = vst [vmem:[%s274 + $0xf8] sm:$0xf] %v2441
        %2698 = vst [vmem:[%s274 + $0xfc] sm:$0xf] %v2442
        %2699 = vst [vmem:[%s274 + $0x100] sm:$0xf] %v2443
        %2700 = vst [vmem:[%s274 + $0x104] sm:$0xf] %v2444
        %2701 = vst [vmem:[%s274 + $0x108] sm:$0xf] %v2445
        %2702 = vst [vmem:[%s274 + $0x10c] sm:$0xf] %v2446
        %2703 = vst [vmem:[%s274 + $0x110] sm:$0xf] %v2447
        %2704 = vst [vmem:[%s274 + $0x114] sm:$0xf] %v2448
        %2705 = vst [vmem:[%s274 + $0x118] sm:$0xf] %v2449
        %2706 = vst [vmem:[%s274 + $0x11c] sm:$0xf] %v2450
        %2707 = vst [vmem:[%s274 + $0x120] sm:$0xf] %v2451
        %2708 = vst [vmem:[%s274 + $0x124] sm:$0xf] %v2452
        %2709 = vst [vmem:[%s274 + $0x128] sm:$0xf] %v2453
        %2710 = vst [vmem:[%s274 + $0x12c] sm:$0xf] %v2454
        %2711 = vst [vmem:[%s274 + $0x130] sm:$0xf] %v2455
        %2712 = vst [vmem:[%s274 + $0x134] sm:$0xf] %v2456
        %2713 = vst [vmem:[%s274 + $0x138] sm:$0xf] %v2457
        %2714 = vst [vmem:[%s274 + $0x13c] sm:$0xf] %v2458
        %2715 = vst [vmem:[%s274 + $0x140] sm:$0xf] %v2459
        %2716 = vst [vmem:[%s274 + $0x144] sm:$0xf] %v2460
        %2717 = vst [vmem:[%s274 + $0x148] sm:$0xf] %v2461
        %2718 = vst [vmem:[%s274 + $0x14c] sm:$0xf] %v2462
        %2719 = vst [vmem:[%s274 + $0x150] sm:$0xf] %v2463
        %2720 = vst [vmem:[%s274 + $0x154] sm:$0xf] %v2464
        %2721 = vst [vmem:[%s274 + $0x158] sm:$0xf] %v2465
        %2722 = vst [vmem:[%s274 + $0x15c] sm:$0xf] %v2466
        %2723 = vst [vmem:[%s274 + $0x160] sm:$0xf] %v2467
        %2724 = vst [vmem:[%s274 + $0x164] sm:$0xf] %v2468
        %2725 = vst [vmem:[%s274 + $0x168] sm:$0xf] %v2469
        %2726 = vst [vmem:[%s274 + $0x16c] sm:$0xf] %v2470
        %2727 = vst [vmem:[%s274 + $0x170] sm:$0xf] %v2471
        %2728 = vst [vmem:[%s274 + $0x174] sm:$0xf] %v2472
        %2729 = vst [vmem:[%s274 + $0x178] sm:$0xf] %v2473
        %2730 = vst [vmem:[%s274 + $0x17c] sm:$0xf] %v2474
        %2731 = vst [vmem:[%s274 + $0x180] sm:$0xf] %v2475
        %2732 = vst [vmem:[%s274 + $0x184] sm:$0xf] %v2476
        %2733 = vst [vmem:[%s274 + $0x188] sm:$0xf] %v2477
        %2734 = vst [vmem:[%s274 + $0x18c] sm:$0xf] %v2478
        %2735 = vst [vmem:[%s274 + $0x190] sm:$0xf] %v2479
        %2736 = vst [vmem:[%s274 + $0x194] sm:$0xf] %v2480
        %2737 = vst [vmem:[%s274 + $0x198] sm:$0xf] %v2481
        %2738 = vst [vmem:[%s274 + $0x19c] sm:$0xf] %v2482
        %2739 = vst [vmem:[%s274 + $0x1a0] sm:$0xf] %v2483
        %2740 = vst [vmem:[%s274 + $0x1a4] sm:$0xf] %v2484
        %2741 = vst [vmem:[%s274 + $0x1a8] sm:$0xf] %v2485
        %2742 = vst [vmem:[%s274 + $0x1ac] sm:$0xf] %v2486
        %2743 = vst [vmem:[%s274 + $0x1b0] sm:$0xf] %v2487
        %2744 = vst [vmem:[%s274 + $0x1b4] sm:$0xf] %v2488
        %2745 = vst [vmem:[%s274 + $0x1b8] sm:$0xf] %v2489
        %2746 = vst [vmem:[%s274 + $0x1bc] sm:$0xf] %v2490
        %2747 = vst [vmem:[%s274 + $0x1c0] sm:$0xf] %v2491
        %2748 = vst [vmem:[%s274 + $0x1c4] sm:$0xf] %v2492
        %2749 = vst [vmem:[%s274 + $0x1c8] sm:$0xf] %v2493
        %2750 = vst [vmem:[%s274 + $0x1cc] sm:$0xf] %v2494
        %2751 = vst [vmem:[%s274 + $0x1d0] sm:$0xf] %v2495
        %2752 = vst [vmem:[%s274 + $0x1d4] sm:$0xf] %v2496
        %2753 = vst [vmem:[%s274 + $0x1d8] sm:$0xf] %v2497
        %2754 = vst [vmem:[%s274 + $0x1dc] sm:$0xf] %v2498
        %2755 = vst [vmem:[%s274 + $0x1e0] sm:$0xf] %v2499
        %2756 = vst [vmem:[%s274 + $0x1e4] sm:$0xf] %v2500
        %2757 = vst [vmem:[%s274 + $0x1e8] sm:$0xf] %v2501
        %2758 = vst [vmem:[%s274 + $0x1ec] sm:$0xf] %v2502
        %2759 = vst [vmem:[%s274 + $0x1f0] sm:$0xf] %v2503
        %2760 = vst [vmem:[%s274 + $0x1f4] sm:$0xf] %v2504
        %2761 = vst [vmem:[%s274 + $0x1f8] sm:$0xf] %v2505
        %2762 = vst [vmem:[%s274 + $0x1fc] sm:$0xf] %v2506
        %s2763 = sand.u32 %s148, 1
        %s2764 = scalar_lea.sflag [#allocation4], %s2763
        %s2765 = sand.u32 %s148, 1
        %s2766 = smul.addr %s2765, 512
        %s2767 = scalar_lea.vmem [#allocation7], %s2766
        // Predicated region
        $region45: #{tpu_custom_call.1} parent=35 // pred_check
          %p2768 = pneg %p158
        $region46: #{tpu_custom_call.1} parent=35 // pred_check_branch
          %2770 = sbr.rel (%p2768) target = $region48
        $region47: #{tpu_custom_call.1} parent=35 // pred_region
          %s2771 = smul.u32 128, %s26
          %s2773 = ssub.s32 8192, 8192
          %2774 = vsyncadd %s2764, %s2773
          %s2775 = sadd.s32 %s27, %s2771
          %s2776 = smul.addr %s2775, 64
          %s2777 = scalar_lea.hbm %s4, %s2776
          %s2778 = sshll.u32 %s2767, 4
          %s2779 = int_to_ptr.vmem [resolvable:$true] %s2778
          %2784 = dma.vmem_to_hbm [thread:$0]  %s2779, 8192, %s2777, %s2764, 64, 64, 4
        $region48: #{tpu_custom_call.1} parent=35 // pred_fallthru
          _
      $region36: #{tpu_custom_call.1} parent=5 // pred_fallthru
        _
      %p2785 = scmp.le.s32.totalorder 2, %s17
      // Predicated region
      $region49: #{tpu_custom_call.1} parent=5 // pred_check
        %p2786 = pneg %p2785
      $region50: #{tpu_custom_call.1} parent=5 // pred_check_branch
        %2788 = sbr.rel (%p2786) target = $region52
      $region51: #{tpu_custom_call.1} parent=5 // pred_region
        %s2789 = ssub.s32 %s17, 2
        // Predicated region
        $region53: #{tpu_custom_call.1} parent=51 // pred_check
          %p2790 = pneg %p164
        $region54: #{tpu_custom_call.1} parent=51 // pred_check_branch
          %2792 = sbr.rel (%p2790) target = $region56
        $region55: #{tpu_custom_call.1} parent=51 // pred_region
          %s2793 = sand.u32 %s149, 1
          %s2794 = scalar_lea.sflag [#allocation4], %s2793
          %s2795 = sand.u32 %s149, 1
          %s2796 = smul.addr %s2795, 512
          %s2797 = scalar_lea.vmem [#allocation7], %s2796
          %2798 = dma.done %s2794, 8192
        $region56: #{tpu_custom_call.1} parent=51 // pred_fallthru
          _
      $region52: #{tpu_custom_call.1} parent=5 // pred_fallthru
        _
    $region6: #{tpu_custom_call.1} parent=1 // loop_footer
      %s21 = sadd.s32 1, %s17
    $region7: #{tpu_custom_call.1} parent=1 // loop_footer_branch
      %16 = sbr.rel target = $region3
    $region8: #{tpu_custom_call.1} parent=1 // loop_exit
      _
    %2799 = vsyncpa [#allocation3], 1
    %s2800 = scalar_lea.sflag [#allocation3], 1
    %2801 = vsyncpa %s2800, 1
    %2802 = vsyncpa [#allocation6], 1
    %2803 = vsyncpa [#allocation4], 1
    %s2804 = scalar_lea.sflag [#allocation4], 1
    %2805 = vsyncpa %s2804, 1

</llo_original>
